<compile_context>
chip_gen: v7x
topology: tpu7x:2x2x1
jax: 0.10.0
libtpu: 0.0.40
codegen_flags: <defaults>
</compile_context>

<pallas_src>
import jax
import jax.numpy as jnp
from jax.experimental import pallas as pl
from jax.experimental.pallas import tpu as pltpu

NUM_LAYERS = 3


def _round_up(x, m):
    return (x + m - 1) // m * m


def _vmem_capacity():
    try:
        return int(pltpu.get_tpu_info().vmem_capacity_bytes)
    except Exception:
        return 64 << 20          # conservative: v7x per-TensorCore VMEM


def _vmem_limit(nbytes):
    """Double-buffered footprint + headroom, clamped to ~75% of physical VMEM."""
    ceiling = (_vmem_capacity() * 3) // 4
    return int(min(max(2 * nbytes + (2 << 20), 8 << 20), ceiling))


def _batch_tile(B):
    """Batch tile for kernel 1; must be B or a multiple of 8 ((8,128) rule)."""
    if B % 8 != 0:
        return B
    for tb in (8, 16, 32):
        if B % tb == 0 and B // tb >= 2:
            return tb
    return B


def _row_tile(rows):
    pref = 512 if _vmem_capacity() >= (100 << 20) else 256
    if rows < pref:
        return _round_up(rows, 8)
    return pref


# ---------------------------------------------------------------------------
# Kernel 1: Bahdanau attention + 3-layer GRU recurrence, grid=(batch, time).
# ---------------------------------------------------------------------------
def decoder_step_kernel(gi0_ref, enc_ref, projk_ref, mask_ref, h0_ref,
                        wq_ref, we_ref,
                        wih0c_ref, wih1_ref, wih2_ref,
                        whh0_ref, whh1_ref, whh2_ref,
                        bih_ref, bhh_ref,
                        dec_ref, ctx_ref, hid_ref):
    t_step = pl.program_id(1)                     # time axis (inner, sequential)
    L, tb, H = hid_ref.shape

    # hidden state lives in the resident hfin output block (accumulator).
    @pl.when(t_step == 0)
    def _init():
        hid_ref[...] = h0_ref[...]

    query = hid_ref[L - 1]                        # (tb, H)  == hidden[-1]

    # ---- Bahdanau attention ----
    q = jnp.dot(query, wq_ref[...], preferred_element_type=jnp.float32)    # (tb, H)
    t = jnp.tanh(q[:, None, :] + projk_ref[...])                           # (tb, S, H)
    we = we_ref[...].reshape(1, 1, H)
    scores = jnp.sum(t * we, axis=-1)                                      # (tb, S)
    # large finite negative instead of -inf: a fully padded row degrades to a
    # uniform distribution instead of producing NaN.
    scores = jnp.where(mask_ref[...] > 0.0, scores, jnp.float32(-1e30))
    scores = scores - jnp.max(scores, axis=-1, keepdims=True)
    es = jnp.exp(scores)
    alphas = es / jnp.sum(es, axis=-1, keepdims=True)                      # (tb, S)

    # context on the MXU: (tb,1,S) @ (tb,S,2H) -> (tb,1,2H)
    ctx3 = jnp.einsum('bqs,bsk->bqk', alphas[:, None, :], enc_ref[...],
                      preferred_element_type=jnp.float32)
    context = ctx3[:, 0, :]                                                # (tb, 2H)

    # ---- 3-layer GRU cell (PyTorch gate order r, z, n) ----
    bih = bih_ref[...]                            # (L, 3H)
    bhh = bhh_ref[...]                            # (L, 3H)

    def gru(gi, gh, h_prev):
        r = jax.nn.sigmoid(gi[:, :H] + gh[:, :H])
        z = jax.nn.sigmoid(gi[:, H:2 * H] + gh[:, H:2 * H])
        n = jnp.tanh(gi[:, 2 * H:] + r * gh[:, 2 * H:])
        return (1.0 - z) * n + z * h_prev

    # layer 0: the embedding part (prev_embed @ wih0_e + bih[0]) was hoisted
    # out of the recurrence and arrives precomputed in gi0_ref.
    h_prev = hid_ref[0]
    gi = gi0_ref[0] + jnp.dot(context, wih0c_ref[...],
                              preferred_element_type=jnp.float32)
    gh = jnp.dot(h_prev, whh0_ref[...], preferred_element_type=jnp.float32) + bhh[0]
    h0n = gru(gi, gh, h_prev)
    hid_ref[0] = h0n

    # layer 1
    h_prev = hid_ref[1]
    gi = jnp.dot(h0n, wih1_ref[...], preferred_element_type=jnp.float32) + bih[1]
    gh = jnp.dot(h_prev, whh1_ref[...], preferred_element_type=jnp.float32) + bhh[1]
    h1n = gru(gi, gh, h_prev)
    hid_ref[1] = h1n

    # layer 2
    h_prev = hid_ref[2]
    gi = jnp.dot(h1n, wih2_ref[...], preferred_element_type=jnp.float32) + bih[2]
    gh = jnp.dot(h_prev, whh2_ref[...], preferred_element_type=jnp.float32) + bhh[2]
    h2n = gru(gi, gh, h_prev)
    hid_ref[2] = h2n

    # pre-output projection + vocab head are deferred to kernel 2.
    dec_ref[0] = h2n
    ctx_ref[0] = context


# ---------------------------------------------------------------------------
# Kernel 2: deferred pre-output projection + vocab GEMM + softmax (row tiles).
# ---------------------------------------------------------------------------
def vocab_head_kernel(emb_ref, dec_ref, ctx_ref,
                      wpe_ref, wph_ref, wpc_ref, wout_ref, probs_ref):
    # p1 = [embed | output | context] @ wpre, concat eliminated by split GEMMs.
    p1 = (jnp.dot(emb_ref[...], wpe_ref[...], preferred_element_type=jnp.float32)
          + jnp.dot(dec_ref[...], wph_ref[...], preferred_element_type=jnp.float32)
          + jnp.dot(ctx_ref[...], wpc_ref[...], preferred_element_type=jnp.float32))
    logits = jnp.dot(p1, wout_ref[...], preferred_element_type=jnp.float32)
    logits = logits - jnp.max(logits, axis=-1, keepdims=True)
    e = jnp.exp(logits)
    probs_ref[...] = e / jnp.sum(e, axis=-1, keepdims=True)


# ---------------------------------------------------------------------------
# Wrapper
# ---------------------------------------------------------------------------
def decoder_forward(params, sou, tar, encoder_outputs, encoder_hiddens):
    B, T = tar.shape
    L = encoder_hiddens.shape[0]
    assert L == NUM_LAYERS, "kernel is specialized to 3 GRU layers"
    E = params['embedding'].shape[1]
    H = params['wq'].shape[0]
    V = params['wout'].shape[1]
    S = sou.shape[1]
    K = 2 * H
    f32 = jnp.float32

    src_mask = (sou != 0).astype(f32)                               # (B, S)
    trg_embed_bt = params['embedding'][tar]                         # (B, T, E)
    trg_embed_tb = jnp.transpose(trg_embed_bt, (1, 0, 2))           # (T, B, E)
    hidden0 = jnp.tanh(encoder_hiddens @ params['w_bridge']
                       + params['b_bridge'])                        # (L, B, H)
    enc = encoder_outputs.astype(f32)                               # (B, S, 2H)
    proj_key = enc @ params['wk']                                   # (B, S, H), one-time GEMM

    # split weights once so the kernels never concatenate along the lane axis
    wih0_e, wih0_c = params['wih0'][:E], params['wih0'][E:]
    wpre_e = params['wpre'][:E]
    wpre_h = params['wpre'][E:E + H]
    wpre_c = params['wpre'][E + H:]

    # Hoisted out of the serial recurrence: embedding part of the layer-0
    # GRU input gate as one batched (T*B, E) @ (E, 3H) GEMM.
    gi0 = trg_embed_tb @ wih0_e + params['bih'][0]                  # (T, B, 3H)

    tb = _batch_tile(B)
    nb = B // tb

    kernel1_inputs = (gi0, enc, proj_key, src_mask, hidden0,
                      params['wq'], params['we'],
                      wih0_c, params['wih1'], params['wih2'],
                      params['whh0'], params['whh1'], params['whh2'],
                      params['bih'], params['bhh'])

    nbytes1 = (sum(int(x.size) * x.dtype.itemsize for x in kernel1_inputs)
               + 4 * (T * B * (H + K) + L * B * H))
    flops1 = int(2 * T * B * (22 * H * H + 3 * S * H))
    trans1 = int(T * B * (S * H + S + 9 * H))

    def _run_recurrence(use_pm):
        def spec(shape, index_map, kind):
            if not use_pm:
                return pl.BlockSpec(shape, index_map)
            pm = pl.Buffered(1) if kind == "resident" else pl.Buffered(3)
            return pl.BlockSpec(shape, index_map, pipeline_mode=pm)

        grid_spec = pltpu.PrefetchScalarGridSpec(
            num_scalar_prefetch=0,
            grid=(nb, T),
            in_specs=[
                spec((1, tb, 3 * H), lambda b, t: (t, b, 0), "stream"),   # gi0 (per step)
                spec((tb, S, K), lambda b, t: (b, 0, 0), "resident"),     # encoder outputs
                spec((tb, S, H), lambda b, t: (b, 0, 0), "resident"),     # proj_key
                spec((tb, S), lambda b, t: (b, 0), "resident"),           # src_mask
                spec((L, tb, H), lambda b, t: (0, b, 0), "resident"),     # bridged hidden0
                spec((H, H), lambda b, t: (0, 0), "resident"),            # wq
                spec((1, H), lambda b, t: (0, 0), "resident"),            # we
                spec((K, 3 * H), lambda b, t: (0, 0), "resident"),        # wih0 (context rows)
                spec((H, 3 * H), lambda b, t: (0, 0), "resident"),        # wih1
                spec((H, 3 * H), lambda b, t: (0, 0), "resident"),        # wih2
                spec((H, 3 * H), lambda b, t: (0, 0), "resident"),        # whh0
                spec((H, 3 * H), lambda b, t: (0, 0), "resident"),        # whh1
                spec((H, 3 * H), lambda b, t: (0, 0), "resident"),        # whh2
                spec((L, 3 * H), lambda b, t: (0, 0), "resident"),        # bih
                spec((L, 3 * H), lambda b, t: (0, 0), "resident"),        # bhh
            ],
            out_specs=(
                pl.BlockSpec((1, tb, H), lambda b, t: (t, b, 0)),         # decoder states
                pl.BlockSpec((1, tb, K), lambda b, t: (t, b, 0)),         # context vectors
                pl.BlockSpec((L, tb, H), lambda b, t: (0, b, 0)),         # hidden (resident acc)
            ),
        )
        return pl.pallas_call(
            decoder_step_kernel,
            out_shape=(jax.ShapeDtypeStruct((T, B, H), f32),
                       jax.ShapeDtypeStruct((T, B, K), f32),
                       jax.ShapeDtypeStruct((L, B, H), f32)),
            grid_spec=grid_spec,
            compiler_params=pltpu.CompilerParams(
                dimension_semantics=("parallel", "arbitrary"),
                vmem_limit_bytes=_vmem_limit(nbytes1)),
            cost_estimate=pl.CostEstimate(flops=flops1, transcendentals=trans1,
                                          bytes_accessed=int(nbytes1)),
        )(*kernel1_inputs)

    try:
        dec, ctx, hfin = _run_recurrence(True)
    except Exception:
        # pipeline_mode / pl.Buffered not supported by this build: fall back
        # to default double-buffering (correct, just more resident VMEM).
        dec, ctx, hfin = _run_recurrence(False)

    # ---- deferred pre-output + vocab projection + softmax over row tiles ----
    rows = B * T
    dec_bt = jnp.transpose(dec, (1, 0, 2))                       # (B, T, H)
    ctx_bt = jnp.transpose(ctx, (1, 0, 2))                       # (B, T, 2H)
    emb_rows = trg_embed_bt.reshape(rows, E)
    dec_rows = dec_bt.reshape(rows, H)
    ctx_rows = ctx_bt.reshape(rows, K)

    row_tile = _row_tile(rows)
    rows_pad = _round_up(rows, row_tile)
    if rows_pad != rows:
        pad = ((0, rows_pad - rows), (0, 0))
        emb_rows = jnp.pad(emb_rows, pad)
        dec_rows = jnp.pad(dec_rows, pad)
        ctx_rows = jnp.pad(ctx_rows, pad)

    nbytes2 = 4 * (rows_pad * (E + H + K + V) + (E + H + K) * H + H * V)
    flops2 = int(2 * rows_pad * ((E + H + K) * H + H * V))
    probs = pl.pallas_call(
        vocab_head_kernel,
        out_shape=jax.ShapeDtypeStruct((rows_pad, V), f32),
        grid_spec=pltpu.PrefetchScalarGridSpec(
            num_scalar_prefetch=0,
            grid=(rows_pad // row_tile,),
            in_specs=[pl.BlockSpec((row_tile, E), lambda r: (r, 0)),
                      pl.BlockSpec((row_tile, H), lambda r: (r, 0)),
                      pl.BlockSpec((row_tile, K), lambda r: (r, 0)),
                      pl.BlockSpec((E, H), lambda r: (0, 0)),
                      pl.BlockSpec((H, H), lambda r: (0, 0)),
                      pl.BlockSpec((K, H), lambda r: (0, 0)),
                      pl.BlockSpec((H, V), lambda r: (0, 0))],
            out_specs=pl.BlockSpec((row_tile, V), lambda r: (r, 0)),
        ),
        compiler_params=pltpu.CompilerParams(
            dimension_semantics=("parallel",),
            vmem_limit_bytes=_vmem_limit(nbytes2)),
        cost_estimate=pl.CostEstimate(flops=flops2,
                                      transcendentals=int(rows_pad * V),
                                      bytes_accessed=int(nbytes2)),
    )(emb_rows, dec_rows, ctx_rows, wpre_e, wpre_h, wpre_c, params['wout'])

    decoder_states = dec_bt                                      # (B, T, H)
    pre_output_vectors = probs[:rows].reshape(B, T, V)           # (B, T, V)
    return decoder_states, hfin, pre_output_vectors


# ---------------------------------------------------------------------------
# Pure-JAX reference mirroring the PyTorch forward (eval mode)
# ---------------------------------------------------------------------------
def decoder_reference(params, sou, tar, encoder_outputs, encoder_hiddens):
    L = encoder_hiddens.shape[0]
    B, T = tar.shape
    H = params['wq'].shape[0]
    src_mask = (sou != 0)
    trg_embed = params['embedding'][tar]
    hidden = jnp.tanh(encoder_hiddens @ params['w_bridge'] + params['b_bridge'])
    proj_key = encoder_outputs @ params['wk']
    wih = [params['wih0'], params['wih1'], params['wih2']]
    whh = [params['whh0'], params['whh1'], params['whh2']]
    dec_states, pre_outs = [], []
    for i in range(T):
        prev_embed = trg_embed[:, i]
        query = hidden[-1]
        q = query @ params['wq']
        t = jnp.tanh(q[:, None, :] + proj_key)
        scores = jnp.sum(t * params['we'].reshape(1, 1, H), axis=-1)
        scores = jnp.where(src_mask, scores, -jnp.inf)
        alphas = jax.nn.softmax(scores, axis=-1)
        context = jnp.sum(alphas[:, :, None] * encoder_outputs, axis=1)
        x = jnp.concatenate([prev_embed, context], axis=-1)
        new_h = []
        for l in range(L):
            h_prev = hidden[l]
            gi = x @ wih[l] + params['bih'][l]
            gh = h_prev @ whh[l] + params['bhh'][l]
            r = jax.nn.sigmoid(gi[:, :H] + gh[:, :H])
            z = jax.nn.sigmoid(gi[:, H:2 * H] + gh[:, H:2 * H])
            n = jnp.tanh(gi[:, 2 * H:] + r * gh[:, 2 * H:])
            h_new = (1.0 - z) * n + z * h_prev
            new_h.append(h_new)
            x = h_new
        hidden = jnp.stack(new_h, axis=0)
        output = x
        pre = jnp.concatenate([prev_embed, output, context], axis=-1)
        probs = jax.nn.softmax(pre @ params['wpre'] @ params['wout'], axis=-1)
        dec_states.append(output[:, None, :])
        pre_outs.append(probs[:, None, :])
    return (jnp.concatenate(dec_states, axis=1), hidden,
            jnp.concatenate(pre_outs, axis=1))


def init_params(key, vocab_size, embedding_dim, hidden_size, num_layers=NUM_LAYERS):
    E, H, V, L = embedding_dim, hidden_size, vocab_size, num_layers
    keys = jax.random.split(key, 16)

    def u(k, shape, scale=0.1):
        return jax.random.uniform(k, shape, jnp.float32, -scale, scale)

    emb = u(keys[0], (V, E)).at[0].set(0.0)         # padding_idx = 0
    return dict(
        embedding=emb,
        w_bridge=u(keys[1], (2 * H, H)), b_bridge=u(keys[2], (H,)),
        wq=u(keys[3], (H, H)),                       # query_layer (no bias)
        wk=u(keys[4], (2 * H, H)),                   # key_layer (no bias)
        we=u(keys[5], (1, H)),                       # energy_layer (no bias)
        wih0=u(keys[6], (E + 2 * H, 3 * H)), wih1=u(keys[7], (H, 3 * H)),
        wih2=u(keys[8], (H, 3 * H)),
        whh0=u(keys[9], (H, 3 * H)), whh1=u(keys[10], (H, 3 * H)),
        whh2=u(keys[11], (H, 3 * H)),
        bih=u(keys[12], (L, 3 * H)), bhh=u(keys[13], (L, 3 * H)),
        wpre=u(keys[14], (E + 3 * H, H)),            # pre_output_layer (no bias)
        wout=u(keys[15], (H, V)),                    # fc_out (no bias)
    )


if __name__ == "__main__":
    B, S, T = 2, 8, 8            # batch, source len, target len (tar_len)
    E, H, V, L = 16, 32, 64, NUM_LAYERS

    key = jax.random.PRNGKey(0)
    kp, ks, kt, ke, kh = jax.random.split(key, 5)
    params = init_params(kp, V, E, H, L)

    sou = jax.random.randint(ks, (B, S), 0, V).astype(jnp.int32)
    sou = sou.at[:, 0].set(1)    # guarantee at least one non-pad source token
    tar = jax.random.randint(kt, (B, T), 0, V).astype(jnp.int32)
    encoder_outputs = jax.random.normal(ke, (B, S, 2 * H), jnp.float32)
    encoder_hiddens = jax.random.normal(kh, (L, B, 2 * H), jnp.float32)

    dec, hid, pre = decoder_forward(params, sou, tar, encoder_outputs, encoder_hiddens)
    jax.block_until_ready((dec, hid, pre))

    dec_r, hid_r, pre_r = decoder_reference(params, sou, tar,
                                            encoder_outputs, encoder_hiddens)
    assert dec.shape == (B, T, H) and hid.shape == (L, B, H) and pre.shape == (B, T, V)
    assert jnp.allclose(dec, dec_r, rtol=1e-3, atol=1e-3), "decoder_states mismatch"
    assert jnp.allclose(hid, hid_r, rtol=1e-3, atol=1e-3), "hidden mismatch"
    assert jnp.allclose(pre, pre_r, rtol=1e-3, atol=1e-3), "pre_output mismatch"
    # decoder_states[:, -1] must equal the top-layer final hidden state
    assert jnp.allclose(dec[:, -1, :], hid[-1], rtol=1e-3, atol=1e-3)

    print("KERNEL_OK")
</pallas_src>

<mosaic_0001>
module attributes {stable_mosaic.version = 11 : i64} {
  func.func @decoder_step_kernel(%arg0: i32, %arg1: i32, %arg2: memref<1x2x96xf32, #tpu.memory_space<vmem>>, %arg3: memref<2x8x64xf32, #tpu.memory_space<vmem>>, %arg4: memref<2x8x32xf32, #tpu.memory_space<vmem>>, %arg5: memref<2x8xf32, #tpu.memory_space<vmem>>, %arg6: memref<3x2x32xf32, #tpu.memory_space<vmem>>, %arg7: memref<32x32xf32, #tpu.memory_space<vmem>>, %arg8: memref<1x32xf32, #tpu.memory_space<vmem>>, %arg9: memref<64x96xf32, #tpu.memory_space<vmem>>, %arg10: memref<32x96xf32, #tpu.memory_space<vmem>>, %arg11: memref<32x96xf32, #tpu.memory_space<vmem>>, %arg12: memref<32x96xf32, #tpu.memory_space<vmem>>, %arg13: memref<32x96xf32, #tpu.memory_space<vmem>>, %arg14: memref<32x96xf32, #tpu.memory_space<vmem>>, %arg15: memref<3x96xf32, #tpu.memory_space<vmem>>, %arg16: memref<3x96xf32, #tpu.memory_space<vmem>>, %arg17: memref<1x2x32xf32, #tpu.memory_space<vmem>>, %arg18: memref<1x2x64xf32, #tpu.memory_space<vmem>>, %arg19: memref<3x2x32xf32, #tpu.memory_space<vmem>>) attributes {dimension_semantics = [#tpu.dimension_semantics<parallel>, #tpu.dimension_semantics<arbitrary>], iteration_bounds = array<i64: 1, 8>, scalar_prefetch = 0 : i64, scratch_operands = 0 : i64, tpu.core_type = #tpu.core_type<tc>, window_params = [{transform_indices = @transform_0, window_bounds = array<i64: 1, 2, 96>}, {transform_indices = @transform_1, window_bounds = array<i64: 2, 8, 64>}, {transform_indices = @transform_2, window_bounds = array<i64: 2, 8, 32>}, {transform_indices = @transform_3, window_bounds = array<i64: 2, 8>}, {transform_indices = @transform_4, window_bounds = array<i64: 3, 2, 32>}, {pipeline_mode = #tpu.pipeline_mode<synchronous>, transform_indices = @transform_5, window_bounds = array<i64: 32, 32>}, {pipeline_mode = #tpu.pipeline_mode<synchronous>, transform_indices = @transform_6, window_bounds = array<i64: 1, 32>}, {pipeline_mode = #tpu.pipeline_mode<synchronous>, transform_indices = @transform_7, window_bounds = array<i64: 64, 96>}, {pipeline_mode = #tpu.pipeline_mode<synchronous>, transform_indices = @transform_8, window_bounds = array<i64: 32, 96>}, {pipeline_mode = #tpu.pipeline_mode<synchronous>, transform_indices = @transform_9, window_bounds = array<i64: 32, 96>}, {pipeline_mode = #tpu.pipeline_mode<synchronous>, transform_indices = @transform_10, window_bounds = array<i64: 32, 96>}, {pipeline_mode = #tpu.pipeline_mode<synchronous>, transform_indices = @transform_11, window_bounds = array<i64: 32, 96>}, {pipeline_mode = #tpu.pipeline_mode<synchronous>, transform_indices = @transform_12, window_bounds = array<i64: 32, 96>}, {pipeline_mode = #tpu.pipeline_mode<synchronous>, transform_indices = @transform_13, window_bounds = array<i64: 3, 96>}, {pipeline_mode = #tpu.pipeline_mode<synchronous>, transform_indices = @transform_14, window_bounds = array<i64: 3, 96>}, {transform_indices = @transform_15, window_bounds = array<i64: 1, 2, 32>}, {transform_indices = @transform_16, window_bounds = array<i64: 1, 2, 64>}, {transform_indices = @transform_17, window_bounds = array<i64: 3, 2, 32>}]} {
    %c0_i32 = arith.constant 0 : i32
    %0 = arith.cmpi eq, %arg1, %c0_i32 : i32
    %1 = arith.extui %0 : i1 to i32
    %c0_i32_0 = arith.constant 0 : i32
    %2 = arith.cmpi ne, %1, %c0_i32_0 : i32
    scf.if %2 {
      %c0_77 = arith.constant 0 : index
      %c0_78 = arith.constant 0 : index
      %c0_79 = arith.constant 0 : index
      %176 = vector.load %arg6[%c0_77, %c0_78, %c0_79] : memref<3x2x32xf32, #tpu.memory_space<vmem>>, vector<3x2x32xf32>
      %c0_80 = arith.constant 0 : index
      %c0_81 = arith.constant 0 : index
      %c0_82 = arith.constant 0 : index
      %177 = vector.load %arg19[%c0_80, %c0_81, %c0_82] : memref<3x2x32xf32, #tpu.memory_space<vmem>>, vector<3x2x32xf32>
      tpu.vector_store %arg19[%c0_80, %c0_81, %c0_82], %176 {strides = array<i32>} : memref<3x2x32xf32, #tpu.memory_space<vmem>>, vector<3x2x32xf32>,
    } else {
    }
    %c2 = arith.constant 2 : index
    %c0 = arith.constant 0 : index
    %c0_1 = arith.constant 0 : index
    %3 = vector.load %arg19[%c2, %c0, %c0_1] : memref<3x2x32xf32, #tpu.memory_space<vmem>>, vector<1x2x32xf32>
    %4 = vector.shape_cast %3 : vector<1x2x32xf32> to vector<2x32xf32>
    %c0_2 = arith.constant 0 : index
    %c0_3 = arith.constant 0 : index
    %5 = vector.load %arg7[%c0_2, %c0_3] : memref<32x32xf32, #tpu.memory_space<vmem>>, vector<32x32xf32>
    %cst = arith.constant dense<0.000000e+00> : vector<2x32xf32>
    %6 = tpu.matmul %4, %5, %cst {dimension_numbers = #tpu.dot_dimension_numbers<[1], [0], [0], [1], [0, 0, 1, 1], [], []>} : vector<2x32xf32>, vector<32x32xf32>, vector<2x32xf32> -> vector<2x32xf32>
    %7 = vector.shape_cast %6 : vector<2x32xf32> to vector<2x1x32xf32>
    %c0_4 = arith.constant 0 : index
    %c0_5 = arith.constant 0 : index
    %c0_6 = arith.constant 0 : index
    %8 = vector.load %arg4[%c0_4, %c0_5, %c0_6] : memref<2x8x32xf32, #tpu.memory_space<vmem>>, vector<2x8x32xf32>
    %9 = vector.broadcast %7 : vector<2x1x32xf32> to vector<2x8x32xf32>
    %10 = arith.addf %9, %8 : vector<2x8x32xf32>
    %11 = math.tanh %10 : vector<2x8x32xf32>
    %c0_7 = arith.constant 0 : index
    %c0_8 = arith.constant 0 : index
    %12 = vector.load %arg8[%c0_7, %c0_8] : memref<1x32xf32, #tpu.memory_space<vmem>>, vector<1x32xf32>
    %13 = vector.shape_cast %12 : vector<1x32xf32> to vector<1x1x32xf32>
    %14 = vector.broadcast %13 : vector<1x1x32xf32> to vector<2x8x32xf32>
    %15 = arith.mulf %11, %14 : vector<2x8x32xf32>
    %cst_9 = arith.constant dense<0.000000e+00> : vector<2x8xf32>
    %16 = vector.multi_reduction <add>, %15, %cst_9 [2] : vector<2x8x32xf32> to vector<2x8xf32>
    %c0_10 = arith.constant 0 : index
    %c0_11 = arith.constant 0 : index
    %17 = vector.load %arg5[%c0_10, %c0_11] : memref<2x8xf32, #tpu.memory_space<vmem>>, vector<2x8xf32>
    %cst_12 = arith.constant 0.000000e+00 : f32
    %18 = vector.broadcast %cst_12 : f32 to vector<2x8xf32>
    %19 = arith.cmpf ogt, %17, %18 : vector<2x8xf32>
    %cst_13 = arith.constant -1.000000e+30 : f32
    %20 = vector.broadcast %cst_13 : f32 to vector<2x8xf32>
    %21 = arith.select %19, %16, %20 : vector<2x8xi1>, vector<2x8xf32>
    %cst_14 = arith.constant dense<0xFF800000> : vector<2xf32>
    %22 = vector.multi_reduction <maximumf>, %21, %cst_14 [1] : vector<2x8xf32> to vector<2xf32>
    %23 = vector.shape_cast %22 : vector<2xf32> to vector<2x1xf32>
    %24 = vector.broadcast %23 : vector<2x1xf32> to vector<2x8xf32>
    %25 = arith.subf %21, %24 : vector<2x8xf32>
    %26 = math.exp %25 : vector<2x8xf32>
    %cst_15 = arith.constant dense<0.000000e+00> : vector<2xf32>
    %27 = vector.multi_reduction <add>, %26, %cst_15 [1] : vector<2x8xf32> to vector<2xf32>
    %28 = vector.shape_cast %27 : vector<2xf32> to vector<2x1xf32>
    %29 = vector.broadcast %28 : vector<2x1xf32> to vector<2x8xf32>
    %30 = arith.divf %26, %29 : vector<2x8xf32>
    %31 = vector.shape_cast %30 : vector<2x8xf32> to vector<2x1x8xf32>
    %c0_16 = arith.constant 0 : index
    %c0_17 = arith.constant 0 : index
    %c0_18 = arith.constant 0 : index
    %32 = vector.load %arg3[%c0_16, %c0_17, %c0_18] : memref<2x8x64xf32, #tpu.memory_space<vmem>>, vector<2x8x64xf32>
    "tpu.trace_start"() <{level = 10 : i32, message = "bqs,bsk->bqk"}> : () -> ()
    %cst_19 = arith.constant dense<0.000000e+00> : vector<2x1x64xf32>
    %33 = tpu.matmul %31, %32, %cst_19 {dimension_numbers = #tpu.dot_dimension_numbers<[2], [1], [1], [2], [0, 0, 0, 1, 1, 2], [0], [0]>} : vector<2x1x8xf32>, vector<2x8x64xf32>, vector<2x1x64xf32> -> vector<2x1x64xf32>
    "tpu.trace_stop"() : () -> ()
    %34 = vector.shape_cast %33 : vector<2x1x64xf32> to vector<2x64xf32>
    %c0_20 = arith.constant 0 : index
    %c0_21 = arith.constant 0 : index
    %35 = vector.load %arg15[%c0_20, %c0_21] : memref<3x96xf32, #tpu.memory_space<vmem>>, vector<3x96xf32>
    %c0_22 = arith.constant 0 : index
    %c0_23 = arith.constant 0 : index
    %36 = vector.load %arg16[%c0_22, %c0_23] : memref<3x96xf32, #tpu.memory_space<vmem>>, vector<3x96xf32>
    %c0_24 = arith.constant 0 : index
    %c0_25 = arith.constant 0 : index
    %c0_26 = arith.constant 0 : index
    %37 = vector.load %arg19[%c0_24, %c0_25, %c0_26] : memref<3x2x32xf32, #tpu.memory_space<vmem>>, vector<1x2x32xf32>
    %38 = vector.shape_cast %37 : vector<1x2x32xf32> to vector<2x32xf32>
    %c0_27 = arith.constant 0 : index
    %c0_28 = arith.constant 0 : index
    %c0_29 = arith.constant 0 : index
    %39 = vector.load %arg2[%c0_27, %c0_28, %c0_29] : memref<1x2x96xf32, #tpu.memory_space<vmem>>, vector<1x2x96xf32>
    %40 = vector.shape_cast %39 : vector<1x2x96xf32> to vector<2x96xf32>
    %c0_30 = arith.constant 0 : index
    %c0_31 = arith.constant 0 : index
    %41 = vector.load %arg9[%c0_30, %c0_31] : memref<64x96xf32, #tpu.memory_space<vmem>>, vector<64x96xf32>
    %cst_32 = arith.constant dense<0.000000e+00> : vector<2x96xf32>
    %42 = tpu.matmul %34, %41, %cst_32 {dimension_numbers = #tpu.dot_dimension_numbers<[1], [0], [0], [1], [0, 0, 1, 1], [], []>} : vector<2x64xf32>, vector<64x96xf32>, vector<2x96xf32> -> vector<2x96xf32>
    %43 = arith.addf %40, %42 : vector<2x96xf32>
    %c0_33 = arith.constant 0 : index
    %c0_34 = arith.constant 0 : index
    %44 = vector.load %arg12[%c0_33, %c0_34] : memref<32x96xf32, #tpu.memory_space<vmem>>, vector<32x96xf32>
    %cst_35 = arith.constant dense<0.000000e+00> : vector<2x96xf32>
    %45 = tpu.matmul %38, %44, %cst_35 {dimension_numbers = #tpu.dot_dimension_numbers<[1], [0], [0], [1], [0, 0, 1, 1], [], []>} : vector<2x32xf32>, vector<32x96xf32>, vector<2x96xf32> -> vector<2x96xf32>
    %46 = vector.extract_strided_slice %36 {offsets = [0, 0], sizes = [1, 96], strides = [1, 1]} : vector<3x96xf32> to vector<1x96xf32>
    %47 = vector.shape_cast %46 : vector<1x96xf32> to vector<96xf32>
    %48 = vector.shape_cast %47 : vector<96xf32> to vector<1x96xf32>
    %49 = vector.broadcast %48 : vector<1x96xf32> to vector<2x96xf32>
    %50 = arith.addf %45, %49 : vector<2x96xf32>
    %51 = vector.extract_strided_slice %43 {offsets = [0, 0], sizes = [2, 32], strides = [1, 1]} : vector<2x96xf32> to vector<2x32xf32>
    %52 = vector.extract_strided_slice %50 {offsets = [0, 0], sizes = [2, 32], strides = [1, 1]} : vector<2x96xf32> to vector<2x32xf32>
    %53 = arith.addf %51, %52 : vector<2x32xf32>
    %54 = arith.negf %53 : vector<2x32xf32>
    %55 = math.exp %54 : vector<2x32xf32>
    %cst_36 = arith.constant 1.000000e+00 : f32
    %56 = vector.broadcast %cst_36 : f32 to vector<2x32xf32>
    %57 = arith.addf %56, %55 : vector<2x32xf32>
    %58 = arith.divf %56, %57 : vector<2x32xf32>
    %59 = vector.extract_strided_slice %43 {offsets = [0, 32], sizes = [2, 32], strides = [1, 1]} : vector<2x96xf32> to vector<2x32xf32>
    %60 = vector.extract_strided_slice %50 {offsets = [0, 32], sizes = [2, 32], strides = [1, 1]} : vector<2x96xf32> to vector<2x32xf32>
    %61 = arith.addf %59, %60 : vector<2x32xf32>
    %62 = arith.negf %61 : vector<2x32xf32>
    %63 = math.exp %62 : vector<2x32xf32>
    %cst_37 = arith.constant 1.000000e+00 : f32
    %64 = vector.broadcast %cst_37 : f32 to vector<2x32xf32>
    %65 = arith.addf %64, %63 : vector<2x32xf32>
    %66 = arith.divf %64, %65 : vector<2x32xf32>
    %67 = vector.extract_strided_slice %43 {offsets = [0, 64], sizes = [2, 32], strides = [1, 1]} : vector<2x96xf32> to vector<2x32xf32>
    %68 = vector.extract_strided_slice %50 {offsets = [0, 64], sizes = [2, 32], strides = [1, 1]} : vector<2x96xf32> to vector<2x32xf32>
    %69 = arith.mulf %58, %68 : vector<2x32xf32>
    %70 = arith.addf %67, %69 : vector<2x32xf32>
    %71 = math.tanh %70 : vector<2x32xf32>
    %cst_38 = arith.constant 1.000000e+00 : f32
    %72 = vector.broadcast %cst_38 : f32 to vector<2x32xf32>
    %73 = arith.subf %72, %66 : vector<2x32xf32>
    %74 = arith.mulf %73, %71 : vector<2x32xf32>
    %75 = arith.mulf %66, %38 : vector<2x32xf32>
    %76 = arith.addf %74, %75 : vector<2x32xf32>
    %c0_39 = arith.constant 0 : index
    %c0_40 = arith.constant 0 : index
    %c0_41 = arith.constant 0 : index
    %77 = vector.load %arg19[%c0_39, %c0_40, %c0_41] : memref<3x2x32xf32, #tpu.memory_space<vmem>>, vector<1x2x32xf32>
    %78 = vector.shape_cast %77 : vector<1x2x32xf32> to vector<2x32xf32>
    %79 = vector.shape_cast %76 : vector<2x32xf32> to vector<1x2x32xf32>
    tpu.vector_store %arg19[%c0_39, %c0_40, %c0_41], %79 {strides = array<i32>} : memref<3x2x32xf32, #tpu.memory_space<vmem>>, vector<1x2x32xf32>,
    %c1 = arith.constant 1 : index
    %c0_42 = arith.constant 0 : index
    %c0_43 = arith.constant 0 : index
    %80 = vector.load %arg19[%c1, %c0_42, %c0_43] : memref<3x2x32xf32, #tpu.memory_space<vmem>>, vector<1x2x32xf32>
    %81 = vector.shape_cast %80 : vector<1x2x32xf32> to vector<2x32xf32>
    %c0_44 = arith.constant 0 : index
    %c0_45 = arith.constant 0 : index
    %82 = vector.load %arg10[%c0_44, %c0_45] : memref<32x96xf32, #tpu.memory_space<vmem>>, vector<32x96xf32>
    %cst_46 = arith.constant dense<0.000000e+00> : vector<2x96xf32>
    %83 = tpu.matmul %76, %82, %cst_46 {dimension_numbers = #tpu.dot_dimension_numbers<[1], [0], [0], [1], [0, 0, 1, 1], [], []>} : vector<2x32xf32>, vector<32x96xf32>, vector<2x96xf32> -> vector<2x96xf32>
    %84 = vector.extract_strided_slice %35 {offsets = [1, 0], sizes = [1, 96], strides = [1, 1]} : vector<3x96xf32> to vector<1x96xf32>
    %85 = vector.shape_cast %84 : vector<1x96xf32> to vector<96xf32>
    %86 = vector.shape_cast %85 : vector<96xf32> to vector<1x96xf32>
    %87 = vector.broadcast %86 : vector<1x96xf32> to vector<2x96xf32>
    %88 = arith.addf %83, %87 : vector<2x96xf32>
    %c0_47 = arith.constant 0 : index
    %c0_48 = arith.constant 0 : index
    %89 = vector.load %arg13[%c0_47, %c0_48] : memref<32x96xf32, #tpu.memory_space<vmem>>, vector<32x96xf32>
    %cst_49 = arith.constant dense<0.000000e+00> : vector<2x96xf32>
    %90 = tpu.matmul %81, %89, %cst_49 {dimension_numbers = #tpu.dot_dimension_numbers<[1], [0], [0], [1], [0, 0, 1, 1], [], []>} : vector<2x32xf32>, vector<32x96xf32>, vector<2x96xf32> -> vector<2x96xf32>
    %91 = vector.extract_strided_slice %36 {offsets = [1, 0], sizes = [1, 96], strides = [1, 1]} : vector<3x96xf32> to vector<1x96xf32>
    %92 = vector.shape_cast %91 : vector<1x96xf32> to vector<96xf32>
    %93 = vector.shape_cast %92 : vector<96xf32> to vector<1x96xf32>
    %94 = vector.broadcast %93 : vector<1x96xf32> to vector<2x96xf32>
    %95 = arith.addf %90, %94 : vector<2x96xf32>
    %96 = vector.extract_strided_slice %88 {offsets = [0, 0], sizes = [2, 32], strides = [1, 1]} : vector<2x96xf32> to vector<2x32xf32>
    %97 = vector.extract_strided_slice %95 {offsets = [0, 0], sizes = [2, 32], strides = [1, 1]} : vector<2x96xf32> to vector<2x32xf32>
    %98 = arith.addf %96, %97 : vector<2x32xf32>
    %99 = arith.negf %98 : vector<2x32xf32>
    %100 = math.exp %99 : vector<2x32xf32>
    %cst_50 = arith.constant 1.000000e+00 : f32
    %101 = vector.broadcast %cst_50 : f32 to vector<2x32xf32>
    %102 = arith.addf %101, %100 : vector<2x32xf32>
    %103 = arith.divf %101, %102 : vector<2x32xf32>
    %104 = vector.extract_strided_slice %88 {offsets = [0, 32], sizes = [2, 32], strides = [1, 1]} : vector<2x96xf32> to vector<2x32xf32>
    %105 = vector.extract_strided_slice %95 {offsets = [0, 32], sizes = [2, 32], strides = [1, 1]} : vector<2x96xf32> to vector<2x32xf32>
    %106 = arith.addf %104, %105 : vector<2x32xf32>
    %107 = arith.negf %106 : vector<2x32xf32>
    %108 = math.exp %107 : vector<2x32xf32>
    %cst_51 = arith.constant 1.000000e+00 : f32
    %109 = vector.broadcast %cst_51 : f32 to vector<2x32xf32>
    %110 = arith.addf %109, %108 : vector<2x32xf32>
    %111 = arith.divf %109, %110 : vector<2x32xf32>
    %112 = vector.extract_strided_slice %88 {offsets = [0, 64], sizes = [2, 32], strides = [1, 1]} : vector<2x96xf32> to vector<2x32xf32>
    %113 = vector.extract_strided_slice %95 {offsets = [0, 64], sizes = [2, 32], strides = [1, 1]} : vector<2x96xf32> to vector<2x32xf32>
    %114 = arith.mulf %103, %113 : vector<2x32xf32>
    %115 = arith.addf %112, %114 : vector<2x32xf32>
    %116 = math.tanh %115 : vector<2x32xf32>
    %cst_52 = arith.constant 1.000000e+00 : f32
    %117 = vector.broadcast %cst_52 : f32 to vector<2x32xf32>
    %118 = arith.subf %117, %111 : vector<2x32xf32>
    %119 = arith.mulf %118, %116 : vector<2x32xf32>
    %120 = arith.mulf %111, %81 : vector<2x32xf32>
    %121 = arith.addf %119, %120 : vector<2x32xf32>
    %c1_53 = arith.constant 1 : index
    %c0_54 = arith.constant 0 : index
    %c0_55 = arith.constant 0 : index
    %122 = vector.load %arg19[%c1_53, %c0_54, %c0_55] : memref<3x2x32xf32, #tpu.memory_space<vmem>>, vector<1x2x32xf32>
    %123 = vector.shape_cast %122 : vector<1x2x32xf32> to vector<2x32xf32>
    %124 = vector.shape_cast %121 : vector<2x32xf32> to vector<1x2x32xf32>
    tpu.vector_store %arg19[%c1_53, %c0_54, %c0_55], %124 {strides = array<i32>} : memref<3x2x32xf32, #tpu.memory_space<vmem>>, vector<1x2x32xf32>,
    %c2_56 = arith.constant 2 : index
    %c0_57 = arith.constant 0 : index
    %c0_58 = arith.constant 0 : index
    %125 = vector.load %arg19[%c2_56, %c0_57, %c0_58] : memref<3x2x32xf32, #tpu.memory_space<vmem>>, vector<1x2x32xf32>
    %126 = vector.shape_cast %125 : vector<1x2x32xf32> to vector<2x32xf32>
    %c0_59 = arith.constant 0 : index
    %c0_60 = arith.constant 0 : index
    %127 = vector.load %arg11[%c0_59, %c0_60] : memref<32x96xf32, #tpu.memory_space<vmem>>, vector<32x96xf32>
    %cst_61 = arith.constant dense<0.000000e+00> : vector<2x96xf32>
    %128 = tpu.matmul %121, %127, %cst_61 {dimension_numbers = #tpu.dot_dimension_numbers<[1], [0], [0], [1], [0, 0, 1, 1], [], []>} : vector<2x32xf32>, vector<32x96xf32>, vector<2x96xf32> -> vector<2x96xf32>
    %129 = vector.extract_strided_slice %35 {offsets = [2, 0], sizes = [1, 96], strides = [1, 1]} : vector<3x96xf32> to vector<1x96xf32>
    %130 = vector.shape_cast %129 : vector<1x96xf32> to vector<96xf32>
    %131 = vector.shape_cast %130 : vector<96xf32> to vector<1x96xf32>
    %132 = vector.broadcast %131 : vector<1x96xf32> to vector<2x96xf32>
    %133 = arith.addf %128, %132 : vector<2x96xf32>
    %c0_62 = arith.constant 0 : index
    %c0_63 = arith.constant 0 : index
    %134 = vector.load %arg14[%c0_62, %c0_63] : memref<32x96xf32, #tpu.memory_space<vmem>>, vector<32x96xf32>
    %cst_64 = arith.constant dense<0.000000e+00> : vector<2x96xf32>
    %135 = tpu.matmul %126, %134, %cst_64 {dimension_numbers = #tpu.dot_dimension_numbers<[1], [0], [0], [1], [0, 0, 1, 1], [], []>} : vector<2x32xf32>, vector<32x96xf32>, vector<2x96xf32> -> vector<2x96xf32>
    %136 = vector.extract_strided_slice %36 {offsets = [2, 0], sizes = [1, 96], strides = [1, 1]} : vector<3x96xf32> to vector<1x96xf32>
    %137 = vector.shape_cast %136 : vector<1x96xf32> to vector<96xf32>
    %138 = vector.shape_cast %137 : vector<96xf32> to vector<1x96xf32>
    %139 = vector.broadcast %138 : vector<1x96xf32> to vector<2x96xf32>
    %140 = arith.addf %135, %139 : vector<2x96xf32>
    %141 = vector.extract_strided_slice %133 {offsets = [0, 0], sizes = [2, 32], strides = [1, 1]} : vector<2x96xf32> to vector<2x32xf32>
    %142 = vector.extract_strided_slice %140 {offsets = [0, 0], sizes = [2, 32], strides = [1, 1]} : vector<2x96xf32> to vector<2x32xf32>
    %143 = arith.addf %141, %142 : vector<2x32xf32>
    %144 = arith.negf %143 : vector<2x32xf32>
    %145 = math.exp %144 : vector<2x32xf32>
    %cst_65 = arith.constant 1.000000e+00 : f32
    %146 = vector.broadcast %cst_65 : f32 to vector<2x32xf32>
    %147 = arith.addf %146, %145 : vector<2x32xf32>
    %148 = arith.divf %146, %147 : vector<2x32xf32>
    %149 = vector.extract_strided_slice %133 {offsets = [0, 32], sizes = [2, 32], strides = [1, 1]} : vector<2x96xf32> to vector<2x32xf32>
    %150 = vector.extract_strided_slice %140 {offsets = [0, 32], sizes = [2, 32], strides = [1, 1]} : vector<2x96xf32> to vector<2x32xf32>
    %151 = arith.addf %149, %150 : vector<2x32xf32>
    %152 = arith.negf %151 : vector<2x32xf32>
    %153 = math.exp %152 : vector<2x32xf32>
    %cst_66 = arith.constant 1.000000e+00 : f32
    %154 = vector.broadcast %cst_66 : f32 to vector<2x32xf32>
    %155 = arith.addf %154, %153 : vector<2x32xf32>
    %156 = arith.divf %154, %155 : vector<2x32xf32>
    %157 = vector.extract_strided_slice %133 {offsets = [0, 64], sizes = [2, 32], strides = [1, 1]} : vector<2x96xf32> to vector<2x32xf32>
    %158 = vector.extract_strided_slice %140 {offsets = [0, 64], sizes = [2, 32], strides = [1, 1]} : vector<2x96xf32> to vector<2x32xf32>
    %159 = arith.mulf %148, %158 : vector<2x32xf32>
    %160 = arith.addf %157, %159 : vector<2x32xf32>
    %161 = math.tanh %160 : vector<2x32xf32>
    %cst_67 = arith.constant 1.000000e+00 : f32
    %162 = vector.broadcast %cst_67 : f32 to vector<2x32xf32>
    %163 = arith.subf %162, %156 : vector<2x32xf32>
    %164 = arith.mulf %163, %161 : vector<2x32xf32>
    %165 = arith.mulf %156, %126 : vector<2x32xf32>
    %166 = arith.addf %164, %165 : vector<2x32xf32>
    %c2_68 = arith.constant 2 : index
    %c0_69 = arith.constant 0 : index
    %c0_70 = arith.constant 0 : index
    %167 = vector.load %arg19[%c2_68, %c0_69, %c0_70] : memref<3x2x32xf32, #tpu.memory_space<vmem>>, vector<1x2x32xf32>
    %168 = vector.shape_cast %167 : vector<1x2x32xf32> to vector<2x32xf32>
    %169 = vector.shape_cast %166 : vector<2x32xf32> to vector<1x2x32xf32>
    tpu.vector_store %arg19[%c2_68, %c0_69, %c0_70], %169 {strides = array<i32>} : memref<3x2x32xf32, #tpu.memory_space<vmem>>, vector<1x2x32xf32>,
    %c0_71 = arith.constant 0 : index
    %c0_72 = arith.constant 0 : index
    %c0_73 = arith.constant 0 : index
    %170 = vector.load %arg17[%c0_71, %c0_72, %c0_73] : memref<1x2x32xf32, #tpu.memory_space<vmem>>, vector<1x2x32xf32>
    %171 = vector.shape_cast %170 : vector<1x2x32xf32> to vector<2x32xf32>
    %172 = vector.shape_cast %166 : vector<2x32xf32> to vector<1x2x32xf32>
    tpu.vector_store %arg17[%c0_71, %c0_72, %c0_73], %172 {strides = array<i32>} : memref<1x2x32xf32, #tpu.memory_space<vmem>>, vector<1x2x32xf32>,
    %c0_74 = arith.constant 0 : index
    %c0_75 = arith.constant 0 : index
    %c0_76 = arith.constant 0 : index
    %173 = vector.load %arg18[%c0_74, %c0_75, %c0_76] : memref<1x2x64xf32, #tpu.memory_space<vmem>>, vector<1x2x64xf32>
    %174 = vector.shape_cast %173 : vector<1x2x64xf32> to vector<2x64xf32>
    %175 = vector.shape_cast %34 : vector<2x64xf32> to vector<1x2x64xf32>
    tpu.vector_store %arg18[%c0_74, %c0_75, %c0_76], %175 {strides = array<i32>} : memref<1x2x64xf32, #tpu.memory_space<vmem>>, vector<1x2x64xf32>,
    return
  }
  func.func @transform_0(%arg0: i32, %arg1: i32) -> (i32, i32, i32) {
    %c0_i32 = arith.constant 0 : i32
    %c0_i32_0 = arith.constant 0 : i32
    return %arg1, %arg0, %c0_i32 : i32, i32, i32
  }
  func.func @transform_1(%arg0: i32, %arg1: i32) -> (i32, i32, i32) {
    %c0_i32 = arith.constant 0 : i32
    %c0_i32_0 = arith.constant 0 : i32
    %c0_i32_1 = arith.constant 0 : i32
    return %arg0, %c0_i32, %c0_i32_0 : i32, i32, i32
  }
  func.func @transform_2(%arg0: i32, %arg1: i32) -> (i32, i32, i32) {
    %c0_i32 = arith.constant 0 : i32
    %c0_i32_0 = arith.constant 0 : i32
    %c0_i32_1 = arith.constant 0 : i32
    return %arg0, %c0_i32, %c0_i32_0 : i32, i32, i32
  }
  func.func @transform_3(%arg0: i32, %arg1: i32) -> (i32, i32) {
    %c0_i32 = arith.constant 0 : i32
    %c0_i32_0 = arith.constant 0 : i32
    return %arg0, %c0_i32 : i32, i32
  }
  func.func @transform_4(%arg0: i32, %arg1: i32) -> (i32, i32, i32) {
    %c0_i32 = arith.constant 0 : i32
    %c0_i32_0 = arith.constant 0 : i32
    %c0_i32_1 = arith.constant 0 : i32
    return %c0_i32, %arg0, %c0_i32_0 : i32, i32, i32
  }
  func.func @transform_5(%arg0: i32, %arg1: i32) -> (i32, i32) {
    %c0_i32 = arith.constant 0 : i32
    %c0_i32_0 = arith.constant 0 : i32
    %c0_i32_1 = arith.constant 0 : i32
    return %c0_i32, %c0_i32_0 : i32, i32
  }
  func.func @transform_6(%arg0: i32, %arg1: i32) -> (i32, i32) {
    %c0_i32 = arith.constant 0 : i32
    %c0_i32_0 = arith.constant 0 : i32
    %c0_i32_1 = arith.constant 0 : i32
    return %c0_i32, %c0_i32_0 : i32, i32
  }
  func.func @transform_7(%arg0: i32, %arg1: i32) -> (i32, i32) {
    %c0_i32 = arith.constant 0 : i32
    %c0_i32_0 = arith.constant 0 : i32
    %c0_i32_1 = arith.constant 0 : i32
    return %c0_i32, %c0_i32_0 : i32, i32
  }
  func.func @transform_8(%arg0: i32, %arg1: i32) -> (i32, i32) {
    %c0_i32 = arith.constant 0 : i32
    %c0_i32_0 = arith.constant 0 : i32
    %c0_i32_1 = arith.constant 0 : i32
    return %c0_i32, %c0_i32_0 : i32, i32
  }
  func.func @transform_9(%arg0: i32, %arg1: i32) -> (i32, i32) {
    %c0_i32 = arith.constant 0 : i32
    %c0_i32_0 = arith.constant 0 : i32
    %c0_i32_1 = arith.constant 0 : i32
    return %c0_i32, %c0_i32_0 : i32, i32
  }
  func.func @transform_10(%arg0: i32, %arg1: i32) -> (i32, i32) {
    %c0_i32 = arith.constant 0 : i32
    %c0_i32_0 = arith.constant 0 : i32
    %c0_i32_1 = arith.constant 0 : i32
    return %c0_i32, %c0_i32_0 : i32, i32
  }
  func.func @transform_11(%arg0: i32, %arg1: i32) -> (i32, i32) {
    %c0_i32 = arith.constant 0 : i32
    %c0_i32_0 = arith.constant 0 : i32
    %c0_i32_1 = arith.constant 0 : i32
    return %c0_i32, %c0_i32_0 : i32, i32
  }
  func.func @transform_12(%arg0: i32, %arg1: i32) -> (i32, i32) {
    %c0_i32 = arith.constant 0 : i32
    %c0_i32_0 = arith.constant 0 : i32
    %c0_i32_1 = arith.constant 0 : i32
    return %c0_i32, %c0_i32_0 : i32, i32
  }
  func.func @transform_13(%arg0: i32, %arg1: i32) -> (i32, i32) {
    %c0_i32 = arith.constant 0 : i32
    %c0_i32_0 = arith.constant 0 : i32
    %c0_i32_1 = arith.constant 0 : i32
    return %c0_i32, %c0_i32_0 : i32, i32
  }
  func.func @transform_14(%arg0: i32, %arg1: i32) -> (i32, i32) {
    %c0_i32 = arith.constant 0 : i32
    %c0_i32_0 = arith.constant 0 : i32
    %c0_i32_1 = arith.constant 0 : i32
    return %c0_i32, %c0_i32_0 : i32, i32
  }
  func.func @transform_15(%arg0: i32, %arg1: i32) -> (i32, i32, i32) {
    %c0_i32 = arith.constant 0 : i32
    %c0_i32_0 = arith.constant 0 : i32
    return %arg1, %arg0, %c0_i32 : i32, i32, i32
  }
  func.func @transform_16(%arg0: i32, %arg1: i32) -> (i32, i32, i32) {
    %c0_i32 = arith.constant 0 : i32
    %c0_i32_0 = arith.constant 0 : i32
    return %arg1, %arg0, %c0_i32 : i32, i32, i32
  }
  func.func @transform_17(%arg0: i32, %arg1: i32) -> (i32, i32, i32) {
    %c0_i32 = arith.constant 0 : i32
    %c0_i32_0 = arith.constant 0 : i32
    %c0_i32_1 = arith.constant 0 : i32
    return %c0_i32, %arg0, %c0_i32_0 : i32, i32, i32
  }
}

</mosaic_0001>

<llo_original>
// kernel: tpu_custom_call.1
$region0: #{tpu_custom_call.1}
  #allocation0 [shape = 'u32[]', space=smem, size = 0x4, offset = 0x4, fixed_abs, tag = 'smem constant byte address 0x4 - core index']
  #allocation1 [shape = 'u32[144,128]{1,0:T(1,128)}', space=vmem, size = 0x12000, scoped, tag = 'internal scratch']
  %s0 = inlined_call_operand.hbm [shape: f32[8,2,96], index: 0, kind: input, shape index: {}]
  %s1 = inlined_call_operand.hbm [shape: f32[2,8,64], index: 1, kind: input, shape index: {}]
  %s2 = inlined_call_operand.hbm [shape: f32[2,8,32], index: 2, kind: input, shape index: {}]
  %s3 = inlined_call_operand.hbm [shape: f32[2,8], index: 3, kind: input, shape index: {}]
  %s4 = inlined_call_operand.hbm [shape: f32[3,2,32], index: 4, kind: input, shape index: {}]
  %s5 = inlined_call_operand.hbm [shape: f32[32,32], index: 5, kind: input, shape index: {}]
  %s6 = inlined_call_operand.vmem [shape: f32[1,32], index: 6, kind: input, shape index: {}]
  %s7 = inlined_call_operand.hbm [shape: f32[64,96], index: 7, kind: input, shape index: {}]
  %s8 = inlined_call_operand.hbm [shape: f32[32,96], index: 8, kind: input, shape index: {}]
  %s9 = inlined_call_operand.vmem [shape: f32[32,96], index: 9, kind: input, shape index: {}]
  %s10 = inlined_call_operand.hbm [shape: f32[32,96], index: 10, kind: input, shape index: {}]
  %s11 = inlined_call_operand.hbm [shape: f32[32,96], index: 11, kind: input, shape index: {}]
  %s12 = inlined_call_operand.hbm [shape: f32[32,96], index: 12, kind: input, shape index: {}]
  %s13 = inlined_call_operand.vmem [shape: f32[3,96], index: 13, kind: input, shape index: {}]
  %s14 = inlined_call_operand.vmem [shape: f32[3,96], index: 14, kind: input, shape index: {}]
  %s15 = inlined_call_operand.hbm [shape: f32[8,2,32], index: 15, kind: output, shape index: {0}]
  %s16 = inlined_call_operand.hbm [shape: f32[8,2,64], index: 16, kind: output, shape index: {1}]
  %s17 = inlined_call_operand.hbm [shape: f32[3,2,32], index: 17, kind: output, shape index: {2}]
  %18 = xla_tuple %s15, %s16, %s17
  %s19 = sld [smem:[#allocation0]]
  $region157: #{tpu_custom_call.1} parent=0
    _
  %s21 = ssub.s32 1, %s19
  %s22 = scalar_select 0, %s21, %s19
  $region1: #{tpu_custom_call.1} parent=0
    #allocation2 [shape = 'u8[2048]{0}', space=vmem, size = 0x800, scoped, tag = 'input window, operand 0']
    #allocation3 [shape = 's32[2]{0}', space=sflag, size = 0x8, scoped, tag = 'scoped memory for tpu_custom_call.1']
    #allocation4 [shape = 's32[2]{0}', space=sflag, size = 0x8, scoped, tag = 'scoped memory for tpu_custom_call.1']
    #allocation5 [shape = 'u8[8192]{0}', space=vmem, size = 0x2000, scoped, tag = 'input window, operand 1, single buffered']
    #allocation6 [shape = 's32[1]{0}', space=sflag, size = 0x4, scoped, tag = 'scoped memory for tpu_custom_call.1']
    #allocation7 [shape = 'u8[8192]{0}', space=vmem, size = 0x2000, scoped, tag = 'input window, operand 2, single buffered']
    #allocation8 [shape = 'u8[1024]{0}', space=vmem, size = 0x400, scoped, tag = 'input window, operand 3, single buffered']
    #allocation9 [shape = 's32[1]{0}', space=sflag, size = 0x4, scoped, tag = 'scoped memory for tpu_custom_call.1']
    #allocation10 [shape = 'u8[3072]{0}', space=vmem, size = 0xc00, scoped, tag = 'input window, operand 4, single buffered']
    #allocation11 [shape = 'u8[16384]{0}', space=vmem, size = 0x4000, scoped, tag = 'input window, operand 5, single buffered']
    #allocation12 [shape = 's32[1]{0}', space=sflag, size = 0x4, scoped, tag = 'scoped memory for tpu_custom_call.1']
    #allocation13 [shape = 'u8[32768]{0}', space=vmem, size = 0x8000, scoped, tag = 'input window, operand 7, single buffered']
    #allocation14 [shape = 'u8[16384]{0}', space=vmem, size = 0x4000, scoped, tag = 'input window, operand 8, single buffered']
    #allocation15 [shape = 's32[1]{0}', space=sflag, size = 0x4, scoped, tag = 'scoped memory for tpu_custom_call.1']
    #allocation16 [shape = 'u8[16384]{0}', space=vmem, size = 0x4000, scoped, tag = 'input window, operand 10, single buffered']
    #allocation17 [shape = 'u8[16384]{0}', space=vmem, size = 0x4000, scoped, tag = 'input window, operand 11, single buffered']
    #allocation18 [shape = 's32[1]{0}', space=sflag, size = 0x4, scoped, tag = 'scoped memory for tpu_custom_call.1']
    #allocation19 [shape = 'u8[16384]{0}', space=vmem, size = 0x4000, scoped, tag = 'input window, operand 12, single buffered']
    #allocation20 [shape = 'u8[2048]{0}', space=vmem, size = 0x800, scoped, tag = 'output window, operand 0']
    #allocation21 [shape = 'u8[2048]{0}', space=vmem, size = 0x800, scoped, tag = 'output window, operand 1']
    #allocation22 [shape = 's32[2]{0}', space=sflag, size = 0x8, scoped, tag = 'scoped memory for tpu_custom_call.1']
    #allocation23 [shape = 'u8[3072]{0}', space=vmem, size = 0xc00, scoped, tag = 'output window, operand 2, single buffered']
    %23 = vsyncpa [#allocation3], 0
    %s24 = scalar_lea.sflag [#allocation3], 1
    %25 = vsyncpa %s24, 0
    %26 = vsyncpa [#allocation6], 0
    %27 = vsyncpa [#allocation9], 0
    %28 = vsyncpa [#allocation12], 0
    %29 = vsyncpa [#allocation15], 0
    %30 = vsyncpa [#allocation18], 0
    %31 = vsyncpa [#allocation4], 0
    %s32 = scalar_lea.sflag [#allocation4], 1
    %33 = vsyncpa %s32, 0
    %34 = vsyncpa [#allocation22], 0
    %s35 = scalar_lea.sflag [#allocation22], 1
    %36 = vsyncpa %s35, 0
    loop: start=0, step=1, limit=10
    $region2: #{tpu_custom_call.1} parent=1 // loop_pre_header
      _
    $region3: #{tpu_custom_call.1} parent=1 // loop_header
      %s38 = sphi 0, %s42
      %p39 = scmp.ge.s32.totalorder %s38, 10
      %s45 = sphi 0, %s57
      %s46 = sphi 0, %s53
      %s47 = sphi 0, %s45
      %s48 = sphi 0, %s46
      %s49 = sphi 0, %s47
      %s50 = sphi 0, %s48
      %s62 = sphi 0, %s64
      %s65 = sphi 0, %s62
      %s66 = sphi 0, %s65
      %s82 = sphi 0, %s66
      %s88 = sphi 0, %s90
      %s91 = sphi 0, %s88
      %s92 = sphi 0, %s91
      %s108 = sphi 0, %s92
      %s114 = sphi 0, %s116
      %s117 = sphi 0, %s114
      %s118 = sphi 0, %s117
      %s134 = sphi 0, %s118
      %s140 = sphi 0, %s142
      %s143 = sphi 0, %s140
      %s144 = sphi 0, %s143
      %s160 = sphi 0, %s144
      %s166 = sphi 0, %s168
      %s169 = sphi 0, %s166
      %s170 = sphi 0, %s169
      %s186 = sphi 0, %s170
      %s190 = sphi 0, %s190
      %s192 = sphi 0, %s190
      %s193 = sphi 0, %s192
      %s207 = sphi 0, %s193
      %s211 = sphi 0, %s211
      %s213 = sphi 0, %s211
      %s214 = sphi 0, %s213
      %s228 = sphi 0, %s214
      %s232 = sphi 0, %s232
      %s234 = sphi 0, %s232
      %s235 = sphi 0, %s234
      %s249 = sphi 0, %s235
      %s253 = sphi 0, %s253
      %s255 = sphi 0, %s253
      %s256 = sphi 0, %s255
      %s270 = sphi 0, %s256
      %s274 = sphi 0, %s274
      %s276 = sphi 0, %s274
      %s277 = sphi 0, %s276
      %s291 = sphi 0, %s277
      %s295 = sphi 0, %s295
      %s297 = sphi 0, %s295
      %s298 = sphi 0, %s297
      %s312 = sphi 0, %s298
      %s316 = sphi 0, %s316
      %s318 = sphi 0, %s316
      %s319 = sphi 0, %s318
      %s333 = sphi 0, %s319
      %s337 = sphi 0, %s337
      %s339 = sphi 0, %s337
      %s340 = sphi 0, %s339
      %s354 = sphi 0, %s340
      %s358 = sphi 0, %s358
      %s360 = sphi 0, %s358
      %s361 = sphi 0, %s360
      %s375 = sphi 0, %s361
      %s379 = sphi 0, %s379
      %s381 = sphi 0, %s379
      %s382 = sphi 0, %s381
      %s396 = sphi 0, %s382
      %s404 = sphi 0, %s406
      %s407 = sphi 0, %s404
      %s408 = sphi 0, %s407
      %s424 = sphi 0, %s408
      %s432 = sphi 0, %s434
      %s435 = sphi 0, %s432
      %s436 = sphi 0, %s435
      %s452 = sphi 0, %s436
      %s458 = sphi 0, %s460
      %s461 = sphi 0, %s458
      %s462 = sphi 0, %s461
      %s478 = sphi 0, %s462
    $region4: #{tpu_custom_call.1} parent=1 // loop_header_branch
      %41 = sbr.rel (%p39) target = $region8
    $region5: #{tpu_custom_call.1} parent=1 // loop_body
      %s43 = ssub.s32 %s38, 1
      %s44 = ssub.s32 %s38, 2
      %s51 = sadd.s32 1, %s46
      %p52 = scmp.ge.s32.totalorder %s51, 8
      %s53 = scalar_select %p52, 0, %s51
      %s54 = sadd.s32 1, %s45
      %s55 = scalar_select %p52, %s54, %s45
      %p56 = scmp.ge.s32.totalorder %s55, 1
      %s57 = scalar_select %p56, 0, %s55
      %s58 = ssub.s32 %s46, %s53
      %s59 = ssub.s32 %s45, %s57
      %s60 = sor.u32 %s58, %s59
      %p61 = scmp.eq.s32.totalorder %s60, 0
      %s63 = sadd.s32 %s62, 1
      %s64 = scalar_select %p61, %s62, %s63
      %p67 = pneg %p61
      %p68 = scmp.eq.s32.totalorder %s38, 7
      %p69 = por %p67, %p68
      %p70 = scmp.ne.s32.totalorder %s62, %s65
      %p71 = scmp.eq.s32.totalorder %s38, 0
      %p72 = por %p70, %p71
      %p73 = scmp.ne.s32.totalorder %s62, %s65
      %p74 = scmp.eq.s32.totalorder %s43, 7
      %p75 = por %p73, %p74
      %p76 = scmp.ne.s32.totalorder %s65, %s66
      %p77 = scmp.eq.s32.totalorder %s43, 0
      %p78 = por %p76, %p77
      %p79 = scmp.ne.s32.totalorder %s65, %s66
      %p80 = scmp.eq.s32.totalorder %s44, 7
      %p81 = por %p79, %p80
      %p83 = scmp.ne.s32.totalorder %s66, %s82
      %p84 = scmp.eq.s32.totalorder %s44, 0
      %p85 = por %p83, %p84
      %s86 = ssub.s32 %s45, %s57
      %p87 = scmp.eq.s32.totalorder %s86, 0
      %s89 = sadd.s32 %s88, 1
      %s90 = scalar_select %p87, %s88, %s89
      %p93 = pneg %p87
      %p94 = scmp.eq.s32.totalorder %s38, 7
      %p95 = por %p93, %p94
      %p96 = scmp.ne.s32.totalorder %s88, %s91
      %p97 = scmp.eq.s32.totalorder %s38, 0
      %p98 = por %p96, %p97
      %p99 = scmp.ne.s32.totalorder %s88, %s91
      %p100 = scmp.eq.s32.totalorder %s43, 7
      %p101 = por %p99, %p100
      %p102 = scmp.ne.s32.totalorder %s91, %s92
      %p103 = scmp.eq.s32.totalorder %s43, 0
      %p104 = por %p102, %p103
      %p105 = scmp.ne.s32.totalorder %s91, %s92
      %p106 = scmp.eq.s32.totalorder %s44, 7
      %p107 = por %p105, %p106
      %p109 = scmp.ne.s32.totalorder %s92, %s108
      %p110 = scmp.eq.s32.totalorder %s44, 0
      %p111 = por %p109, %p110
      %s112 = ssub.s32 %s45, %s57
      %p113 = scmp.eq.s32.totalorder %s112, 0
      %s115 = sadd.s32 %s114, 1
      %s116 = scalar_select %p113, %s114, %s115
      %p119 = pneg %p113
      %p120 = scmp.eq.s32.totalorder %s38, 7
      %p121 = por %p119, %p120
      %p122 = scmp.ne.s32.totalorder %s114, %s117
      %p123 = scmp.eq.s32.totalorder %s38, 0
      %p124 = por %p122, %p123
      %p125 = scmp.ne.s32.totalorder %s114, %s117
      %p126 = scmp.eq.s32.totalorder %s43, 7
      %p127 = por %p125, %p126
      %p128 = scmp.ne.s32.totalorder %s117, %s118
      %p129 = scmp.eq.s32.totalorder %s43, 0
      %p130 = por %p128, %p129
      %p131 = scmp.ne.s32.totalorder %s117, %s118
      %p132 = scmp.eq.s32.totalorder %s44, 7
      %p133 = por %p131, %p132
      %p135 = scmp.ne.s32.totalorder %s118, %s134
      %p136 = scmp.eq.s32.totalorder %s44, 0
      %p137 = por %p135, %p136
      %s138 = ssub.s32 %s45, %s57
      %p139 = scmp.eq.s32.totalorder %s138, 0
      %s141 = sadd.s32 %s140, 1
      %s142 = scalar_select %p139, %s140, %s141
      %p145 = pneg %p139
      %p146 = scmp.eq.s32.totalorder %s38, 7
      %p147 = por %p145, %p146
      %p148 = scmp.ne.s32.totalorder %s140, %s143
      %p149 = scmp.eq.s32.totalorder %s38, 0
      %p150 = por %p148, %p149
      %p151 = scmp.ne.s32.totalorder %s140, %s143
      %p152 = scmp.eq.s32.totalorder %s43, 7
      %p153 = por %p151, %p152
      %p154 = scmp.ne.s32.totalorder %s143, %s144
      %p155 = scmp.eq.s32.totalorder %s43, 0
      %p156 = por %p154, %p155
      %p157 = scmp.ne.s32.totalorder %s143, %s144
      %p158 = scmp.eq.s32.totalorder %s44, 7
      %p159 = por %p157, %p158
      %p161 = scmp.ne.s32.totalorder %s144, %s160
      %p162 = scmp.eq.s32.totalorder %s44, 0
      %p163 = por %p161, %p162
      %s164 = ssub.s32 %s45, %s57
      %p165 = scmp.eq.s32.totalorder %s164, 0
      %s167 = sadd.s32 %s166, 1
      %s168 = scalar_select %p165, %s166, %s167
      %p171 = pneg %p165
      %p172 = scmp.eq.s32.totalorder %s38, 7
      %p173 = por %p171, %p172
      %p174 = scmp.ne.s32.totalorder %s166, %s169
      %p175 = scmp.eq.s32.totalorder %s38, 0
      %p176 = por %p174, %p175
      %p177 = scmp.ne.s32.totalorder %s166, %s169
      %p178 = scmp.eq.s32.totalorder %s43, 7
      %p179 = por %p177, %p178
      %p180 = scmp.ne.s32.totalorder %s169, %s170
      %p181 = scmp.eq.s32.totalorder %s43, 0
      %p182 = por %p180, %p181
      %p183 = scmp.ne.s32.totalorder %s169, %s170
      %p184 = scmp.eq.s32.totalorder %s44, 7
      %p185 = por %p183, %p184
      %p187 = scmp.ne.s32.totalorder %s170, %s186
      %p188 = scmp.eq.s32.totalorder %s44, 0
      %p189 = por %p187, %p188
      %s191 = sadd.s32 %s190, 1
      %p194 = scmp.eq.s32.totalorder %s38, 7
      %p195 = scmp.ne.s32.totalorder %s190, %s192
      %p196 = scmp.eq.s32.totalorder %s38, 0
      %p197 = por %p195, %p196
      %p198 = scmp.ne.s32.totalorder %s190, %s192
      %p199 = scmp.eq.s32.totalorder %s43, 7
      %p200 = por %p198, %p199
      %p201 = scmp.ne.s32.totalorder %s192, %s193
      %p202 = scmp.eq.s32.totalorder %s43, 0
      %p203 = por %p201, %p202
      %p204 = scmp.ne.s32.totalorder %s192, %s193
      %p205 = scmp.eq.s32.totalorder %s44, 7
      %p206 = por %p204, %p205
      %p208 = scmp.ne.s32.totalorder %s193, %s207
      %p209 = scmp.eq.s32.totalorder %s44, 0
      %p210 = por %p208, %p209
      %s212 = sadd.s32 %s211, 1
      %p215 = scmp.eq.s32.totalorder %s38, 7
      %p216 = scmp.ne.s32.totalorder %s211, %s213
      %p217 = scmp.eq.s32.totalorder %s38, 0
      %p218 = por %p216, %p217
      %p219 = scmp.ne.s32.totalorder %s211, %s213
      %p220 = scmp.eq.s32.totalorder %s43, 7
      %p221 = por %p219, %p220
      %p222 = scmp.ne.s32.totalorder %s213, %s214
      %p223 = scmp.eq.s32.totalorder %s43, 0
      %p224 = por %p222, %p223
      %p225 = scmp.ne.s32.totalorder %s213, %s214
      %p226 = scmp.eq.s32.totalorder %s44, 7
      %p227 = por %p225, %p226
      %p229 = scmp.ne.s32.totalorder %s214, %s228
      %p230 = scmp.eq.s32.totalorder %s44, 0
      %p231 = por %p229, %p230
      %s233 = sadd.s32 %s232, 1
      %p236 = scmp.eq.s32.totalorder %s38, 7
      %p237 = scmp.ne.s32.totalorder %s232, %s234
      %p238 = scmp.eq.s32.totalorder %s38, 0
      %p239 = por %p237, %p238
      %p240 = scmp.ne.s32.totalorder %s232, %s234
      %p241 = scmp.eq.s32.totalorder %s43, 7
      %p242 = por %p240, %p241
      %p243 = scmp.ne.s32.totalorder %s234, %s235
      %p244 = scmp.eq.s32.totalorder %s43, 0
      %p245 = por %p243, %p244
      %p246 = scmp.ne.s32.totalorder %s234, %s235
      %p247 = scmp.eq.s32.totalorder %s44, 7
      %p248 = por %p246, %p247
      %p250 = scmp.ne.s32.totalorder %s235, %s249
      %p251 = scmp.eq.s32.totalorder %s44, 0
      %p252 = por %p250, %p251
      %s254 = sadd.s32 %s253, 1
      %p257 = scmp.eq.s32.totalorder %s38, 7
      %p258 = scmp.ne.s32.totalorder %s253, %s255
      %p259 = scmp.eq.s32.totalorder %s38, 0
      %p260 = por %p258, %p259
      %p261 = scmp.ne.s32.totalorder %s253, %s255
      %p262 = scmp.eq.s32.totalorder %s43, 7
      %p263 = por %p261, %p262
      %p264 = scmp.ne.s32.totalorder %s255, %s256
      %p265 = scmp.eq.s32.totalorder %s43, 0
      %p266 = por %p264, %p265
      %p267 = scmp.ne.s32.totalorder %s255, %s256
      %p268 = scmp.eq.s32.totalorder %s44, 7
      %p269 = por %p267, %p268
      %p271 = scmp.ne.s32.totalorder %s256, %s270
      %p272 = scmp.eq.s32.totalorder %s44, 0
      %p273 = por %p271, %p272
      %s275 = sadd.s32 %s274, 1
      %p278 = scmp.eq.s32.totalorder %s38, 7
      %p279 = scmp.ne.s32.totalorder %s274, %s276
      %p280 = scmp.eq.s32.totalorder %s38, 0
      %p281 = por %p279, %p280
      %p282 = scmp.ne.s32.totalorder %s274, %s276
      %p283 = scmp.eq.s32.totalorder %s43, 7
      %p284 = por %p282, %p283
      %p285 = scmp.ne.s32.totalorder %s276, %s277
      %p286 = scmp.eq.s32.totalorder %s43, 0
      %p287 = por %p285, %p286
      %p288 = scmp.ne.s32.totalorder %s276, %s277
      %p289 = scmp.eq.s32.totalorder %s44, 7
      %p290 = por %p288, %p289
      %p292 = scmp.ne.s32.totalorder %s277, %s291
      %p293 = scmp.eq.s32.totalorder %s44, 0
      %p294 = por %p292, %p293
      %s296 = sadd.s32 %s295, 1
      %p299 = scmp.eq.s32.totalorder %s38, 7
      %p300 = scmp.ne.s32.totalorder %s295, %s297
      %p301 = scmp.eq.s32.totalorder %s38, 0
      %p302 = por %p300, %p301
      %p303 = scmp.ne.s32.totalorder %s295, %s297
      %p304 = scmp.eq.s32.totalorder %s43, 7
      %p305 = por %p303, %p304
      %p306 = scmp.ne.s32.totalorder %s297, %s298
      %p307 = scmp.eq.s32.totalorder %s43, 0
      %p308 = por %p306, %p307
      %p309 = scmp.ne.s32.totalorder %s297, %s298
      %p310 = scmp.eq.s32.totalorder %s44, 7
      %p311 = por %p309, %p310
      %p313 = scmp.ne.s32.totalorder %s298, %s312
      %p314 = scmp.eq.s32.totalorder %s44, 0
      %p315 = por %p313, %p314
      %s317 = sadd.s32 %s316, 1
      %p320 = scmp.eq.s32.totalorder %s38, 7
      %p321 = scmp.ne.s32.totalorder %s316, %s318
      %p322 = scmp.eq.s32.totalorder %s38, 0
      %p323 = por %p321, %p322
      %p324 = scmp.ne.s32.totalorder %s316, %s318
      %p325 = scmp.eq.s32.totalorder %s43, 7
      %p326 = por %p324, %p325
      %p327 = scmp.ne.s32.totalorder %s318, %s319
      %p328 = scmp.eq.s32.totalorder %s43, 0
      %p329 = por %p327, %p328
      %p330 = scmp.ne.s32.totalorder %s318, %s319
      %p331 = scmp.eq.s32.totalorder %s44, 7
      %p332 = por %p330, %p331
      %p334 = scmp.ne.s32.totalorder %s319, %s333
      %p335 = scmp.eq.s32.totalorder %s44, 0
      %p336 = por %p334, %p335
      %s338 = sadd.s32 %s337, 1
      %p341 = scmp.eq.s32.totalorder %s38, 7
      %p342 = scmp.ne.s32.totalorder %s337, %s339
      %p343 = scmp.eq.s32.totalorder %s38, 0
      %p344 = por %p342, %p343
      %p345 = scmp.ne.s32.totalorder %s337, %s339
      %p346 = scmp.eq.s32.totalorder %s43, 7
      %p347 = por %p345, %p346
      %p348 = scmp.ne.s32.totalorder %s339, %s340
      %p349 = scmp.eq.s32.totalorder %s43, 0
      %p350 = por %p348, %p349
      %p351 = scmp.ne.s32.totalorder %s339, %s340
      %p352 = scmp.eq.s32.totalorder %s44, 7
      %p353 = por %p351, %p352
      %p355 = scmp.ne.s32.totalorder %s340, %s354
      %p356 = scmp.eq.s32.totalorder %s44, 0
      %p357 = por %p355, %p356
      %s359 = sadd.s32 %s358, 1
      %p362 = scmp.eq.s32.totalorder %s38, 7
      %p363 = scmp.ne.s32.totalorder %s358, %s360
      %p364 = scmp.eq.s32.totalorder %s38, 0
      %p365 = por %p363, %p364
      %p366 = scmp.ne.s32.totalorder %s358, %s360
      %p367 = scmp.eq.s32.totalorder %s43, 7
      %p368 = por %p366, %p367
      %p369 = scmp.ne.s32.totalorder %s360, %s361
      %p370 = scmp.eq.s32.totalorder %s43, 0
      %p371 = por %p369, %p370
      %p372 = scmp.ne.s32.totalorder %s360, %s361
      %p373 = scmp.eq.s32.totalorder %s44, 7
      %p374 = por %p372, %p373
      %p376 = scmp.ne.s32.totalorder %s361, %s375
      %p377 = scmp.eq.s32.totalorder %s44, 0
      %p378 = por %p376, %p377
      %s380 = sadd.s32 %s379, 1
      %p383 = scmp.eq.s32.totalorder %s38, 7
      %p384 = scmp.ne.s32.totalorder %s379, %s381
      %p385 = scmp.eq.s32.totalorder %s38, 0
      %p386 = por %p384, %p385
      %p387 = scmp.ne.s32.totalorder %s379, %s381
      %p388 = scmp.eq.s32.totalorder %s43, 7
      %p389 = por %p387, %p388
      %p390 = scmp.ne.s32.totalorder %s381, %s382
      %p391 = scmp.eq.s32.totalorder %s43, 0
      %p392 = por %p390, %p391
      %p393 = scmp.ne.s32.totalorder %s381, %s382
      %p394 = scmp.eq.s32.totalorder %s44, 7
      %p395 = por %p393, %p394
      %p397 = scmp.ne.s32.totalorder %s382, %s396
      %p398 = scmp.eq.s32.totalorder %s44, 0
      %p399 = por %p397, %p398
      %s400 = ssub.s32 %s46, %s53
      %s401 = ssub.s32 %s45, %s57
      %s402 = sor.u32 %s400, %s401
      %p403 = scmp.eq.s32.totalorder %s402, 0
      %s405 = sadd.s32 %s404, 1
      %s406 = scalar_select %p403, %s404, %s405
      %p409 = pneg %p403
      %p410 = scmp.eq.s32.totalorder %s38, 7
      %p411 = por %p409, %p410
      %p412 = scmp.ne.s32.totalorder %s404, %s407
      %p413 = scmp.eq.s32.totalorder %s38, 0
      %p414 = por %p412, %p413
      %p415 = scmp.ne.s32.totalorder %s404, %s407
      %p416 = scmp.eq.s32.totalorder %s43, 7
      %p417 = por %p415, %p416
      %p418 = scmp.ne.s32.totalorder %s407, %s408
      %p419 = scmp.eq.s32.totalorder %s43, 0
      %p420 = por %p418, %p419
      %p421 = scmp.ne.s32.totalorder %s407, %s408
      %p422 = scmp.eq.s32.totalorder %s44, 7
      %p423 = por %p421, %p422
      %p425 = scmp.ne.s32.totalorder %s408, %s424
      %p426 = scmp.eq.s32.totalorder %s44, 0
      %p427 = por %p425, %p426
      %s428 = ssub.s32 %s46, %s53
      %s429 = ssub.s32 %s45, %s57
      %s430 = sor.u32 %s428, %s429
      %p431 = scmp.eq.s32.totalorder %s430, 0
      %s433 = sadd.s32 %s432, 1
      %s434 = scalar_select %p431, %s432, %s433
      %p437 = pneg %p431
      %p438 = scmp.eq.s32.totalorder %s38, 7
      %p439 = por %p437, %p438
      %p440 = scmp.ne.s32.totalorder %s432, %s435
      %p441 = scmp.eq.s32.totalorder %s38, 0
      %p442 = por %p440, %p441
      %p443 = scmp.ne.s32.totalorder %s432, %s435
      %p444 = scmp.eq.s32.totalorder %s43, 7
      %p445 = por %p443, %p444
      %p446 = scmp.ne.s32.totalorder %s435, %s436
      %p447 = scmp.eq.s32.totalorder %s43, 0
      %p448 = por %p446, %p447
      %p449 = scmp.ne.s32.totalorder %s435, %s436
      %p450 = scmp.eq.s32.totalorder %s44, 7
      %p451 = por %p449, %p450
      %p453 = scmp.ne.s32.totalorder %s436, %s452
      %p454 = scmp.eq.s32.totalorder %s44, 0
      %p455 = por %p453, %p454
      %s456 = ssub.s32 %s45, %s57
      %p457 = scmp.eq.s32.totalorder %s456, 0
      %s459 = sadd.s32 %s458, 1
      %s460 = scalar_select %p457, %s458, %s459
      %p463 = pneg %p457
      %p464 = scmp.eq.s32.totalorder %s38, 7
      %p465 = por %p463, %p464
      %p466 = scmp.ne.s32.totalorder %s458, %s461
      %p467 = scmp.eq.s32.totalorder %s38, 0
      %p468 = por %p466, %p467
      %p469 = scmp.ne.s32.totalorder %s458, %s461
      %p470 = scmp.eq.s32.totalorder %s43, 7
      %p471 = por %p469, %p470
      %p472 = scmp.ne.s32.totalorder %s461, %s462
      %p473 = scmp.eq.s32.totalorder %s43, 0
      %p474 = por %p472, %p473
      %p475 = scmp.ne.s32.totalorder %s461, %s462
      %p476 = scmp.eq.s32.totalorder %s44, 7
      %p477 = por %p475, %p476
      %p479 = scmp.ne.s32.totalorder %s462, %s478
      %p480 = scmp.eq.s32.totalorder %s44, 0
      %p481 = por %p479, %p480
      %p482 = scmp.le.s32.totalorder 1, %s38
      %p483 = scmp.lt.s32.totalorder %s38, 9
      %p484 = pnand %p482, %p483
      %p485 = pneg %p484
      // Predicated region
      $region9: #{tpu_custom_call.1} parent=5 // pred_check
        _
      $region10: #{tpu_custom_call.1} parent=5 // pred_check_branch
        %487 = sbr.rel (%p484) target = $region12
      $region11: #{tpu_custom_call.1} parent=5 // pred_region
        %s488 = ssub.s32 %s38, 1
        // Predicated region
        $region13: #{tpu_custom_call.1} parent=11 // pred_check
          %p489 = pneg %p104
        $region14: #{tpu_custom_call.1} parent=11 // pred_check_branch
          %491 = sbr.rel (%p489) target = $region16
        $region15: #{tpu_custom_call.1} parent=11 // pred_region
          %s492 = smul.u32 2, %s47
          %s494 = ssub.s32 256, 256
          %495 = vsyncadd [#allocation6], %s494
          %s496 = smul.addr %s492, 128
          %s497 = scalar_lea.hbm %s1, %s496
          %s498 = sshll.u32 [#allocation5], 4
          %s499 = int_to_ptr.vmem [resolvable:$true] %s498
          %504 = dma.hbm_to_vmem [thread:$0]  %s497, 256, %s499, [#allocation6], 128, 128, 8
        $region16: #{tpu_custom_call.1} parent=11 // pred_fallthru
          _
        // Predicated region
        $region17: #{tpu_custom_call.1} parent=11 // pred_check
          %p505 = pneg %p130
        $region18: #{tpu_custom_call.1} parent=11 // pred_check_branch
          %507 = sbr.rel (%p505) target = $region20
        $region19: #{tpu_custom_call.1} parent=11 // pred_region
          %s508 = smul.u32 2, %s47
          %s510 = ssub.s32 256, 256
          %511 = vsyncadd [#allocation6], %s510
          %s512 = smul.addr %s508, 128
          %s513 = scalar_lea.hbm %s2, %s512
          %s514 = sshll.u32 [#allocation7], 4
          %s515 = int_to_ptr.vmem [resolvable:$true] %s514
          %520 = dma.hbm_to_vmem [thread:$0]  %s513, 256, %s515, [#allocation6], 128, 128, 8
        $region20: #{tpu_custom_call.1} parent=11 // pred_fallthru
          _
        // Predicated region
        $region21: #{tpu_custom_call.1} parent=11 // pred_check
          %p521 = pneg %p156
        $region22: #{tpu_custom_call.1} parent=11 // pred_check_branch
          %523 = sbr.rel (%p521) target = $region24
        $region23: #{tpu_custom_call.1} parent=11 // pred_region
          %s525 = ssub.s32 32, 32
          %526 = vsyncadd [#allocation9], %s525
          %s527 = smul.addr %s47, 32
          %s528 = scalar_lea.hbm %s3, %s527
          %s530 = sshll.u32 [#allocation8], 4
          %s531 = int_to_ptr.vmem [resolvable:$true] %s530
          %533 = dma.hbm_to_vmem [thread:$0]  %s528, 32, %s531, [#allocation9]
        $region24: #{tpu_custom_call.1} parent=11 // pred_fallthru
          _
        // Predicated region
        $region25: #{tpu_custom_call.1} parent=11 // pred_check
          %p534 = pneg %p182
        $region26: #{tpu_custom_call.1} parent=11 // pred_check_branch
          %536 = sbr.rel (%p534) target = $region28
        $region27: #{tpu_custom_call.1} parent=11 // pred_region
          %s538 = ssub.s32 96, 96
          %539 = vsyncadd [#allocation9], %s538
          %s540 = smul.addr %s47, 32
          %s541 = scalar_lea.hbm %s4, %s540
          %s542 = sshll.u32 [#allocation10], 4
          %s543 = int_to_ptr.vmem [resolvable:$true] %s542
          %548 = dma.hbm_to_vmem [thread:$0]  %s541, 96, %s543, [#allocation9], 32, 32, 2
        $region28: #{tpu_custom_call.1} parent=11 // pred_fallthru
          _
        // Predicated region
        $region29: #{tpu_custom_call.1} parent=11 // pred_check
          %p549 = pneg %p203
        $region30: #{tpu_custom_call.1} parent=11 // pred_check_branch
          %551 = sbr.rel (%p549) target = $region32
        $region31: #{tpu_custom_call.1} parent=11 // pred_region
          %s553 = ssub.s32 512, 512
          %554 = vsyncadd [#allocation12], %s553
          %s555 = sshll.u32 [#allocation11], 4
          %s556 = int_to_ptr.vmem [resolvable:$true] %s555
          %561 = dma.hbm_to_vmem [thread:$0]  %s5, 512, %s556, [#allocation12], 128, 128, 8
        $region32: #{tpu_custom_call.1} parent=11 // pred_fallthru
          _
        // Predicated region
        $region33: #{tpu_custom_call.1} parent=11 // pred_check
          %p562 = pneg %p224
        $region34: #{tpu_custom_call.1} parent=11 // pred_check_branch
          %564 = sbr.rel (%p562) target = $region36
        $region35: #{tpu_custom_call.1} parent=11 // pred_region
          _
        $region36: #{tpu_custom_call.1} parent=11 // pred_fallthru
          _
        // Predicated region
        $region37: #{tpu_custom_call.1} parent=11 // pred_check
          %p565 = pneg %p245
        $region38: #{tpu_custom_call.1} parent=11 // pred_check_branch
          %567 = sbr.rel (%p565) target = $region40
        $region39: #{tpu_custom_call.1} parent=11 // pred_region
          %s569 = ssub.s32 1024, 1024
          %570 = vsyncadd [#allocation12], %s569
          %s571 = sshll.u32 [#allocation13], 4
          %s572 = int_to_ptr.vmem [resolvable:$true] %s571
          %577 = dma.hbm_to_vmem [thread:$0]  %s7, 1024, %s572, [#allocation12], 128, 128, 8
        $region40: #{tpu_custom_call.1} parent=11 // pred_fallthru
          _
        // Predicated region
        $region41: #{tpu_custom_call.1} parent=11 // pred_check
          %p578 = pneg %p266
        $region42: #{tpu_custom_call.1} parent=11 // pred_check_branch
          %580 = sbr.rel (%p578) target = $region44
        $region43: #{tpu_custom_call.1} parent=11 // pred_region
          %s582 = ssub.s32 512, 512
          %583 = vsyncadd [#allocation15], %s582
          %s584 = sshll.u32 [#allocation14], 4
          %s585 = int_to_ptr.vmem [resolvable:$true] %s584
          %590 = dma.hbm_to_vmem [thread:$0]  %s8, 512, %s585, [#allocation15], 128, 128, 8
        $region44: #{tpu_custom_call.1} parent=11 // pred_fallthru
          _
        // Predicated region
        $region45: #{tpu_custom_call.1} parent=11 // pred_check
          %p591 = pneg %p287
        $region46: #{tpu_custom_call.1} parent=11 // pred_check_branch
          %593 = sbr.rel (%p591) target = $region48
        $region47: #{tpu_custom_call.1} parent=11 // pred_region
          _
        $region48: #{tpu_custom_call.1} parent=11 // pred_fallthru
          _
        // Predicated region
        $region49: #{tpu_custom_call.1} parent=11 // pred_check
          %p594 = pneg %p308
        $region50: #{tpu_custom_call.1} parent=11 // pred_check_branch
          %596 = sbr.rel (%p594) target = $region52
        $region51: #{tpu_custom_call.1} parent=11 // pred_region
          %s598 = ssub.s32 512, 512
          %599 = vsyncadd [#allocation15], %s598
          %s600 = sshll.u32 [#allocation16], 4
          %s601 = int_to_ptr.vmem [resolvable:$true] %s600
          %606 = dma.hbm_to_vmem [thread:$0]  %s10, 512, %s601, [#allocation15], 128, 128, 8
        $region52: #{tpu_custom_call.1} parent=11 // pred_fallthru
          _
        // Predicated region
        $region53: #{tpu_custom_call.1} parent=11 // pred_check
          %p607 = pneg %p329
        $region54: #{tpu_custom_call.1} parent=11 // pred_check_branch
          %609 = sbr.rel (%p607) target = $region56
        $region55: #{tpu_custom_call.1} parent=11 // pred_region
          %s611 = ssub.s32 512, 512
          %612 = vsyncadd [#allocation18], %s611
          %s613 = sshll.u32 [#allocation17], 4
          %s614 = int_to_ptr.vmem [resolvable:$true] %s613
          %619 = dma.hbm_to_vmem [thread:$0]  %s11, 512, %s614, [#allocation18], 128, 128, 8
        $region56: #{tpu_custom_call.1} parent=11 // pred_fallthru
          _
        // Predicated region
        $region57: #{tpu_custom_call.1} parent=11 // pred_check
          %p620 = pneg %p350
        $region58: #{tpu_custom_call.1} parent=11 // pred_check_branch
          %622 = sbr.rel (%p620) target = $region60
        $region59: #{tpu_custom_call.1} parent=11 // pred_region
          %s624 = ssub.s32 512, 512
          %625 = vsyncadd [#allocation18], %s624
          %s626 = sshll.u32 [#allocation19], 4
          %s627 = int_to_ptr.vmem [resolvable:$true] %s626
          %632 = dma.hbm_to_vmem [thread:$0]  %s12, 512, %s627, [#allocation18], 128, 128, 8
        $region60: #{tpu_custom_call.1} parent=11 // pred_fallthru
          _
        // Predicated region
        $region61: #{tpu_custom_call.1} parent=11 // pred_check
          %p633 = pneg %p371
        $region62: #{tpu_custom_call.1} parent=11 // pred_check_branch
          %635 = sbr.rel (%p633) target = $region64
        $region63: #{tpu_custom_call.1} parent=11 // pred_region
          _
        $region64: #{tpu_custom_call.1} parent=11 // pred_fallthru
          _
        // Predicated region
        $region65: #{tpu_custom_call.1} parent=11 // pred_check
          %p636 = pneg %p392
        $region66: #{tpu_custom_call.1} parent=11 // pred_check_branch
          %638 = sbr.rel (%p636) target = $region68
        $region67: #{tpu_custom_call.1} parent=11 // pred_region
          _
        $region68: #{tpu_custom_call.1} parent=11 // pred_fallthru
          _
      $region12: #{tpu_custom_call.1} parent=5 // pred_fallthru
        _
      %p639 = scmp.lt.s32.totalorder %s38, 8
      // Predicated region
      $region69: #{tpu_custom_call.1} parent=5 // pred_check
        %p640 = pneg %p639
      $region70: #{tpu_custom_call.1} parent=5 // pred_check_branch
        %642 = sbr.rel (%p640) target = $region72
      $region71: #{tpu_custom_call.1} parent=5 // pred_region
        // Predicated region
        $region73: #{tpu_custom_call.1} parent=71 // pred_check
          %p643 = pneg %p72
        $region74: #{tpu_custom_call.1} parent=71 // pred_check_branch
          %645 = sbr.rel (%p643) target = $region76
        $region75: #{tpu_custom_call.1} parent=71 // pred_region
          %s646 = sand.u32 %s62, 1
          %s647 = scalar_lea.sflag [#allocation3], %s646
          %s648 = sand.u32 %s62, 1
          %s649 = smul.addr %s648, 2
          %s650 = scalar_lea.vmem [#allocation2], %s649
          %s652 = ssub.s32 32, 32
          %653 = vsyncadd %s647, %s652
          %s654 = sadd.s32 %s45, %s46
          %s655 = smul.addr %s654, 32
          %s656 = scalar_lea.hbm %s0, %s655
          %s658 = sshll.u32 %s650, 4
          %s659 = int_to_ptr.vmem [resolvable:$true] %s658
          %661 = dma.hbm_to_vmem [thread:$0]  %s656, 32, %s659, %s647
        $region76: #{tpu_custom_call.1} parent=71 // pred_fallthru
          _
      $region72: #{tpu_custom_call.1} parent=5 // pred_fallthru
        _
      %p662 = scmp.le.s32.totalorder 1, %s38
      %p663 = scmp.lt.s32.totalorder %s38, 9
      %p664 = pnand %p662, %p663
      %p665 = pneg %p664
      // Predicated region
      $region77: #{tpu_custom_call.1} parent=5 // pred_check
        _
      $region78: #{tpu_custom_call.1} parent=5 // pred_check_branch
        %667 = sbr.rel (%p664) target = $region80
      $region79: #{tpu_custom_call.1} parent=5 // pred_region
        %s668 = ssub.s32 %s38, 1
        %s669 = sand.u32 %s65, 1
        %s670 = scalar_lea.sflag [#allocation3], %s669
        %s671 = sand.u32 %s65, 1
        %s672 = smul.addr %s671, 2
        %s673 = scalar_lea.vmem [#allocation2], %s672
        // Predicated region
        $region81: #{tpu_custom_call.1} parent=79 // pred_check
          %p674 = pneg %p78
        $region82: #{tpu_custom_call.1} parent=79 // pred_check_branch
          %676 = sbr.rel (%p674) target = $region84
        $region83: #{tpu_custom_call.1} parent=79 // pred_region
          %677 = dma.done %s670, 32
        $region84: #{tpu_custom_call.1} parent=79 // pred_fallthru
          _
        // Predicated region
        $region85: #{tpu_custom_call.1} parent=79 // pred_check
          %p678 = pneg %p104
        $region86: #{tpu_custom_call.1} parent=79 // pred_check_branch
          %680 = sbr.rel (%p678) target = $region88
        $region87: #{tpu_custom_call.1} parent=79 // pred_region
          %681 = dma.done [#allocation6], 256
        $region88: #{tpu_custom_call.1} parent=79 // pred_fallthru
          _
        // Predicated region
        $region89: #{tpu_custom_call.1} parent=79 // pred_check
          %p682 = pneg %p130
        $region90: #{tpu_custom_call.1} parent=79 // pred_check_branch
          %684 = sbr.rel (%p682) target = $region92
        $region91: #{tpu_custom_call.1} parent=79 // pred_region
          %685 = dma.done [#allocation6], 256
        $region92: #{tpu_custom_call.1} parent=79 // pred_fallthru
          _
        // Predicated region
        $region93: #{tpu_custom_call.1} parent=79 // pred_check
          %p686 = pneg %p156
        $region94: #{tpu_custom_call.1} parent=79 // pred_check_branch
          %688 = sbr.rel (%p686) target = $region96
        $region95: #{tpu_custom_call.1} parent=79 // pred_region
          %689 = dma.done [#allocation9], 32
        $region96: #{tpu_custom_call.1} parent=79 // pred_fallthru
          _
        // Predicated region
        $region97: #{tpu_custom_call.1} parent=79 // pred_check
          %p690 = pneg %p182
        $region98: #{tpu_custom_call.1} parent=79 // pred_check_branch
          %692 = sbr.rel (%p690) target = $region100
        $region99: #{tpu_custom_call.1} parent=79 // pred_region
          %693 = dma.done [#allocation9], 96
        $region100: #{tpu_custom_call.1} parent=79 // pred_fallthru
          _
        // Predicated region
        $region101: #{tpu_custom_call.1} parent=79 // pred_check
          %p694 = pneg %p203
        $region102: #{tpu_custom_call.1} parent=79 // pred_check_branch
          %696 = sbr.rel (%p694) target = $region104
        $region103: #{tpu_custom_call.1} parent=79 // pred_region
          %697 = dma.done [#allocation12], 512
        $region104: #{tpu_custom_call.1} parent=79 // pred_fallthru
          _
        // Predicated region
        $region105: #{tpu_custom_call.1} parent=79 // pred_check
          %p698 = pneg %p245
        $region106: #{tpu_custom_call.1} parent=79 // pred_check_branch
          %700 = sbr.rel (%p698) target = $region108
        $region107: #{tpu_custom_call.1} parent=79 // pred_region
          %701 = dma.done [#allocation12], 1024
        $region108: #{tpu_custom_call.1} parent=79 // pred_fallthru
          _
        // Predicated region
        $region109: #{tpu_custom_call.1} parent=79 // pred_check
          %p702 = pneg %p266
        $region110: #{tpu_custom_call.1} parent=79 // pred_check_branch
          %704 = sbr.rel (%p702) target = $region112
        $region111: #{tpu_custom_call.1} parent=79 // pred_region
          %705 = dma.done [#allocation15], 512
        $region112: #{tpu_custom_call.1} parent=79 // pred_fallthru
          _
        // Predicated region
        $region113: #{tpu_custom_call.1} parent=79 // pred_check
          %p706 = pneg %p308
        $region114: #{tpu_custom_call.1} parent=79 // pred_check_branch
          %708 = sbr.rel (%p706) target = $region116
        $region115: #{tpu_custom_call.1} parent=79 // pred_region
          %709 = dma.done [#allocation15], 512
        $region116: #{tpu_custom_call.1} parent=79 // pred_fallthru
          _
        // Predicated region
        $region117: #{tpu_custom_call.1} parent=79 // pred_check
          %p710 = pneg %p329
        $region118: #{tpu_custom_call.1} parent=79 // pred_check_branch
          %712 = sbr.rel (%p710) target = $region120
        $region119: #{tpu_custom_call.1} parent=79 // pred_region
          %713 = dma.done [#allocation18], 512
        $region120: #{tpu_custom_call.1} parent=79 // pred_fallthru
          _
        // Predicated region
        $region121: #{tpu_custom_call.1} parent=79 // pred_check
          %p714 = pneg %p350
        $region122: #{tpu_custom_call.1} parent=79 // pred_check_branch
          %716 = sbr.rel (%p714) target = $region124
        $region123: #{tpu_custom_call.1} parent=79 // pred_region
          %717 = dma.done [#allocation18], 512
        $region124: #{tpu_custom_call.1} parent=79 // pred_fallthru
          _
        %s718 = sand.u32 %s65, 1
        %s719 = scalar_lea.sflag [#allocation3], %s718
        %s720 = sand.u32 %s65, 1
        %s721 = smul.addr %s720, 2
        %s722 = scalar_lea.vmem [#allocation2], %s721
        %p723 = pneg %p78
        %p724 = pneg %p75
        %p725 = pneg %p104
        %p726 = pneg %p101
        %p727 = pneg %p130
        %p728 = pneg %p127
        %p729 = pneg %p156
        %p730 = pneg %p153
        %p731 = pneg %p182
        %p732 = pneg %p179
        %p733 = pneg %p203
        %p734 = pneg %p200
        %p735 = pneg %p224
        %p736 = pneg %p221
        %p737 = pneg %p245
        %p738 = pneg %p242
        %p739 = pneg %p266
        %p740 = pneg %p263
        %p741 = pneg %p287
        %p742 = pneg %p284
        %p743 = pneg %p308
        %p744 = pneg %p305
        %p745 = pneg %p329
        %p746 = pneg %p326
        %p747 = pneg %p350
        %p748 = pneg %p347
        %p749 = pneg %p371
        %p750 = pneg %p368
        %p751 = pneg %p392
        %p752 = pneg %p389
        %p753 = pneg %p420
        %p754 = pneg %p417
        %s755 = sand.u32 %s407, 1
        %s756 = scalar_lea.sflag [#allocation4], %s755
        %s757 = sand.u32 %s407, 1
        %s758 = smul.addr %s757, 2
        %s759 = scalar_lea.vmem [#allocation20], %s758
        %p760 = pneg %p448
        %p761 = pneg %p445
        %s762 = sand.u32 %s43, 1
        %s763 = scalar_lea.sflag [#allocation22], %s762
        %s764 = sand.u32 %s435, 1
        %s765 = smul.addr %s764, 2
        %s766 = scalar_lea.vmem [#allocation21], %s765
        %p767 = pneg %p474
        %p768 = pneg %p471
        %s769 = smul.u32 2, %s47
        %s770 = smul.u32 2, %s47
        %p771 = scmp.eq.s32.totalorder %s48, 0
        // Predicated region
        $region125: #{tpu_custom_call.1} parent=79 // pred_check
          %p772 = pneg %p771
        $region126: #{tpu_custom_call.1} parent=79 // pred_check_branch
          %774 = sbr.rel (%p772) target = $region128
        $region127: #{tpu_custom_call.1} parent=79 // pred_region
          %v775 = vld [vmem:[#allocation10] sm:$0x3]
          %v776 = vld [vmem:[#allocation10 + $0x2] sm:$0x3]
          %v777 = vld [vmem:[#allocation10 + $0x4] sm:$0x3]
          %vm778 = vcmask 254976
          %779 = vst.msk [vmem:[#allocation23] sm:$0x3] %vm778, %v775
          %780 = vst.msk [vmem:[#allocation23 + $0x2] sm:$0x3] %vm778, %v776
          %781 = vst.msk [vmem:[#allocation23 + $0x4] sm:$0x3] %vm778, %v777
        $region128: #{tpu_custom_call.1} parent=79 // pred_fallthru
          _
        %s782 = scalar_lea.vmem [#allocation23], 4
        %v783 = vld [vmem:[%s782] sm:$0x3]
        %v784 = vld [vmem:[#allocation11] sm:$0xff]
        %v785 = vld [vmem:[#allocation11 + $0x8] sm:$0xff]
        %v786 = vld [vmem:[#allocation11 + $0x10] sm:$0xff]
        %v787 = vld [vmem:[#allocation11 + $0x18] sm:$0xff]
        %vm788 = vcmask 261120
        %v790 = vsel %vm788, %v783, 0
        %792 = vmatprep.subr.mxu0 0.0
        %793 = vmatpush1.msra.mxu0 %v784
        %794 = vmatprep.subr.mxu0 0.0
        %795 = vmatpush1.msra.mxu0 %v785
        %796 = vmatprep.subr.mxu0 0.0
        %797 = vmatpush1.msra.mxu0 %v786
        %798 = vmatprep.subr.mxu0 0.0
        %799 = vmatpush1.msra.mxu0 %v787
        %800 = vmatprep.subr.mxu0 0.0
        %801 = vmatpush1.msra.mxu0 0.0
        %802 = vmatprep.subr.mxu0 0.0
        %803 = vmatpush1.msra.mxu0 0.0
        %804 = vmatprep.subr.mxu0 0.0
        %805 = vmatpush1.msra.mxu0 0.0
        %806 = vmatprep.subr.mxu0 0.0
        %807 = vmatpush1.msra.mxu0 0.0
        %808 = vmatprep.subr.mxu0 0.0
        %809 = vmatpush1.msra.mxu0 0.0
        %810 = vmatprep.subr.mxu0 0.0
        %811 = vmatpush1.msra.mxu0 0.0
        %812 = vmatprep.subr.mxu0 0.0
        %813 = vmatpush1.msra.mxu0 0.0
        %814 = vmatprep.subr.mxu0 0.0
        %815 = vmatpush1.msra.mxu0 0.0
        %816 = vmatprep.subr.mxu0 0.0
        %817 = vmatpush1.msra.mxu0 0.0
        %818 = vmatprep.subr.mxu0 0.0
        %819 = vmatpush1.msra.mxu0 0.0
        %820 = vmatprep.subr.mxu0 0.0
        %821 = vmatpush1.msra.mxu0 0.0
        %822 = vmatprep.subr.mxu0 0.0
        %823 = vmatpush1.msra.mxu0 0.0
        %824 = vmatprep.subr.mxu0 0.0
        %825 = vmatpush1.msra.mxu0 0.0
        %826 = vmatprep.subr.mxu0 0.0
        %827 = vmatpush1.msra.mxu0 0.0
        %828 = vmatprep.subr.mxu0 0.0
        %829 = vmatpush1.msra.mxu0 0.0
        %830 = vmatprep.subr.mxu0 0.0
        %831 = vmatpush1.msra.mxu0 0.0
        %832 = vmatprep.subr.mxu0 0.0
        %833 = vmatpush1.msra.mxu0 0.0
        %834 = vmatprep.subr.mxu0 0.0
        %835 = vmatpush1.msra.mxu0 0.0
        %836 = vmatprep.subr.mxu0 0.0
        %837 = vmatpush1.msra.mxu0 0.0
        %838 = vmatprep.subr.mxu0 0.0
        %839 = vmatpush1.msra.mxu0 0.0
        %840 = vmatprep.subr.mxu0 0.0
        %841 = vmatpush1.msra.mxu0 0.0
        %842 = vmatprep.subr.mxu0 0.0
        %843 = vmatpush1.msra.mxu0 0.0
        %844 = vmatprep.subr.mxu0 0.0
        %845 = vmatpush1.msra.mxu0 0.0
        %846 = vmatprep.subr.mxu0 0.0
        %847 = vmatpush1.msra.mxu0 0.0
        %848 = vmatprep.subr.mxu0 0.0
        %849 = vmatpush1.msra.mxu0 0.0
        %850 = vmatprep.subr.mxu0 0.0
        %851 = vmatpush1.msra.mxu0 0.0
        %852 = vmatprep.subr.mxu0 0.0
        %853 = vmatpush1.msra.mxu0 0.0
        %854 = vmatprep.subr.mxu0 0.0
        %855 = vmatpush1.msra.mxu0 0.0
        %856 = vmatprep.mubr.f32.mxu0 0.0
        %857 = vmatmul.mubr.f32.gmra.mrb[0].mxu0 %v790
        %v858 = vpop.f32.mrb[0].mxu0
        %v859 = vadd.f32 0.0, %v858
        %v860 = vpop.f32.mrb[0].mxu0
        %861 = vdwg.mxu0
        %v864 = vunpack.c.l.s4 1966171168
        %v865 = vunpack.c.0.s8 %v864
        %v866 = vlaneseq
        %v867 = vshrl.u32 %v866, 7
        %v868 = vsub.s32 %v865, %v867
        %v869 = vrot.slane %v859, %v868
        %v870 = vcombine.high %v869, %v869
        %v872 = vunpack.c.l.s4 1966171168
        %v873 = vunpack.c.0.s8 %v872
        %v874 = vlaneseq
        %v875 = vshrl.u32 %v874, 7
        %v876 = vsub.s32 %v873, %v875
        %v877 = vrot.slane %v869, %v876
        %v879 = vunpack.c.l.s4 1966171168
        %v880 = vunpack.c.0.s8 %v879
        %v881 = vlaneseq
        %v882 = vshrl.u32 %v881, 7
        %v883 = vsub.s32 %v880, %v882
        %v884 = vrot.slane %v870, %v883
        %v885 = vld [vmem:[#allocation7] sm:$0xff]
        %v886 = vld [vmem:[#allocation7 + $0x8] sm:$0xff]
        %v887 = vlaneseq
        %v888 = vshrl.u32 %v887, 7
        %v889 = vsub.s32 0, %v888
        %v890 = vrot.slane %v877, %v889
        %v891 = vlaneseq
        %v892 = vshrl.u32 %v891, 7
        %v893 = vsub.s32 0, %v892
        %v894 = vrot.slane %v884, %v893
        %v897 = vadd.f32 %v890, %v885
        %v898 = vadd.f32 %v894, %v886
        %v899 = vtanh.pop %v897
        %v900 = vtanh.pop %v898
        %v901 = vld [vmem:[%s6] sm:$0x1]
        %v903 = vlaneseq
        %v904 = vshrl.u32 %v903, 7
        %v905 = vsub.s32 0, %v904
        %v906 = vrot.slane %v901, %v905
        %v908 = vmul.f32 %v899, %v906
        %v909 = vmul.f32 %v900, %v906
        %v910 = vsel %vm788, %v908, 0.0
        %911 = vadd.xlane.f32.xlu0 %v910
        %v912 = vpop.xlane.xlu0 %911
        %v913 = vsel %vm788, %v909, 0.0
        %914 = vadd.xlane.f32.xlu0 %v913
        %v915 = vpop.xlane.xlu0 %914
        %v916 = vld [vmem:[#allocation8] sm:$0x3]
        %vm917 = vcmp.gt.f32.partialorder %v916, 0.0
        %v920 = vlaneseq
        %v921 = vand.u32 %v920, 127
        %v922 = vlaneseq
        %v923 = vshrl.u32 %v922, 7
        %v924 = vsub.s32 %v921, %v923
        %v925 = vrot.slane %v912, %v924
        %v926 = vlaneseq
        %v927 = vshrl.u32 %v926, 7
        %v928 = vsub.s32 %v921, %v927
        %v929 = vrot.slane %v915, %v928
        %vm930 = vcmask 1041409
        %v931 = vsel %vm930, %v929, %v925
        %v933 = vsel %vm917, %v931, -1e+30
        %vm934 = vcmask 58368
        %v935 = vsel %vm934, %v933, -inf
        %936 = vmax.xlane.f32.xlu0 %v935
        %v937 = vpop.xlane.xlu0 %936
        %v938 = vsub.f32 %v933, %v937
        %v939 = vmul.f32 %v938, 1.442695
        %v940 = vpow.pop %v939
        %v941 = vsel %vm934, %v940, 0.0
        %942 = vadd.xlane.f32.xlu0 %v941
        %v943 = vpop.xlane.xlu0 %942
        %v944 = vrcp.pop %v943
        %v945 = vmul.f32 %v940, %v944
        %v948 = vunpack.c.l.s4 1966171168
        %v949 = vunpack.c.0.s8 %v948
        %v950 = vlaneseq
        %v951 = vshrl.u32 %v950, 7
        %v952 = vsub.s32 %v949, %v951
        %v953 = vrot.slane %v945, %v952
        %v954 = vcombine.high %v953, %v953
        %v956 = vunpack.c.l.s4 1966171168
        %v957 = vunpack.c.0.s8 %v956
        %v958 = vlaneseq
        %v959 = vshrl.u32 %v958, 7
        %v960 = vsub.s32 %v957, %v959
        %v961 = vrot.slane %v953, %v960
        %v963 = vunpack.c.l.s4 1966171168
        %v964 = vunpack.c.0.s8 %v963
        %v965 = vlaneseq
        %v966 = vshrl.u32 %v965, 7
        %v967 = vsub.s32 %v964, %v966
        %v968 = vrot.slane %v954, %v967
        %v969 = vld [vmem:[#allocation5] sm:$0xff]
        %v970 = vld [vmem:[#allocation5 + $0x8] sm:$0xff]
        %vm971 = vcmask 64512
        %v972 = vsel %vm971, %v961, 0
        %974 = vmatprep.subr.mxu0 0.0
        %975 = vmatpush1.msra.mxu0 %v969
        %976 = vmatprep.subr.mxu0 0.0
        %977 = vmatpush1.msra.mxu0 0.0
        %978 = vmatprep.subr.mxu0 0.0
        %979 = vmatpush1.msra.mxu0 0.0
        %980 = vmatprep.subr.mxu0 0.0
        %981 = vmatpush1.msra.mxu0 0.0
        %982 = vmatprep.subr.mxu0 0.0
        %983 = vmatpush1.msra.mxu0 0.0
        %984 = vmatprep.subr.mxu0 0.0
        %985 = vmatpush1.msra.mxu0 0.0
        %986 = vmatprep.subr.mxu0 0.0
        %987 = vmatpush1.msra.mxu0 0.0
        %988 = vmatprep.subr.mxu0 0.0
        %989 = vmatpush1.msra.mxu0 0.0
        %990 = vmatprep.subr.mxu0 0.0
        %991 = vmatpush1.msra.mxu0 0.0
        %992 = vmatprep.subr.mxu0 0.0
        %993 = vmatpush1.msra.mxu0 0.0
        %994 = vmatprep.subr.mxu0 0.0
        %995 = vmatpush1.msra.mxu0 0.0
        %996 = vmatprep.subr.mxu0 0.0
        %997 = vmatpush1.msra.mxu0 0.0
        %998 = vmatprep.subr.mxu0 0.0
        %999 = vmatpush1.msra.mxu0 0.0
        %1000 = vmatprep.subr.mxu0 0.0
        %1001 = vmatpush1.msra.mxu0 0.0
        %1002 = vmatprep.subr.mxu0 0.0
        %1003 = vmatpush1.msra.mxu0 0.0
        %1004 = vmatprep.subr.mxu0 0.0
        %1005 = vmatpush1.msra.mxu0 0.0
        %1006 = vmatprep.subr.mxu0 0.0
        %1007 = vmatpush1.msra.mxu0 0.0
        %1008 = vmatprep.subr.mxu0 0.0
        %1009 = vmatpush1.msra.mxu0 0.0
        %1010 = vmatprep.subr.mxu0 0.0
        %1011 = vmatpush1.msra.mxu0 0.0
        %1012 = vmatprep.subr.mxu0 0.0
        %1013 = vmatpush1.msra.mxu0 0.0
        %1014 = vmatprep.subr.mxu0 0.0
        %1015 = vmatpush1.msra.mxu0 0.0
        %1016 = vmatprep.subr.mxu0 0.0
        %1017 = vmatpush1.msra.mxu0 0.0
        %1018 = vmatprep.subr.mxu0 0.0
        %1019 = vmatpush1.msra.mxu0 0.0
        %1020 = vmatprep.subr.mxu0 0.0
        %1021 = vmatpush1.msra.mxu0 0.0
        %1022 = vmatprep.subr.mxu0 0.0
        %1023 = vmatpush1.msra.mxu0 0.0
        %1024 = vmatprep.subr.mxu0 0.0
        %1025 = vmatpush1.msra.mxu0 0.0
        %1026 = vmatprep.subr.mxu0 0.0
        %1027 = vmatpush1.msra.mxu0 0.0
        %1028 = vmatprep.subr.mxu0 0.0
        %1029 = vmatpush1.msra.mxu0 0.0
        %1030 = vmatprep.subr.mxu0 0.0
        %1031 = vmatpush1.msra.mxu0 0.0
        %1032 = vmatprep.subr.mxu0 0.0
        %1033 = vmatpush1.msra.mxu0 0.0
        %1034 = vmatprep.subr.mxu0 0.0
        %1035 = vmatpush1.msra.mxu0 0.0
        %1036 = vmatprep.subr.mxu0 0.0
        %1037 = vmatpush1.msra.mxu0 0.0
        %1038 = vmatprep.mubr.f32.mxu0 0.0
        %1039 = vmatmul.mubr.f32.gmra.mrb[0].mxu0 %v972
        %v1040 = vpop.f32.mrb[0].mxu0
        %v1041 = vadd.f32 0.0, %v1040
        %v1042 = vpop.f32.mrb[0].mxu0
        %1043 = vdwg.mxu0
        %v1044 = vsel %vm971, %v968, 0
        %1046 = vmatprep.subr.mxu0 0.0
        %1047 = vmatpush1.msra.mxu0 %v970
        %1048 = vmatprep.subr.mxu0 0.0
        %1049 = vmatpush1.msra.mxu0 0.0
        %1050 = vmatprep.subr.mxu0 0.0
        %1051 = vmatpush1.msra.mxu0 0.0
        %1052 = vmatprep.subr.mxu0 0.0
        %1053 = vmatpush1.msra.mxu0 0.0
        %1054 = vmatprep.subr.mxu0 0.0
        %1055 = vmatpush1.msra.mxu0 0.0
        %1056 = vmatprep.subr.mxu0 0.0
        %1057 = vmatpush1.msra.mxu0 0.0
        %1058 = vmatprep.subr.mxu0 0.0
        %1059 = vmatpush1.msra.mxu0 0.0
        %1060 = vmatprep.subr.mxu0 0.0
        %1061 = vmatpush1.msra.mxu0 0.0
        %1062 = vmatprep.subr.mxu0 0.0
        %1063 = vmatpush1.msra.mxu0 0.0
        %1064 = vmatprep.subr.mxu0 0.0
        %1065 = vmatpush1.msra.mxu0 0.0
        %1066 = vmatprep.subr.mxu0 0.0
        %1067 = vmatpush1.msra.mxu0 0.0
        %1068 = vmatprep.subr.mxu0 0.0
        %1069 = vmatpush1.msra.mxu0 0.0
        %1070 = vmatprep.subr.mxu0 0.0
        %1071 = vmatpush1.msra.mxu0 0.0
        %1072 = vmatprep.subr.mxu0 0.0
        %1073 = vmatpush1.msra.mxu0 0.0
        %1074 = vmatprep.subr.mxu0 0.0
        %1075 = vmatpush1.msra.mxu0 0.0
        %1076 = vmatprep.subr.mxu0 0.0
        %1077 = vmatpush1.msra.mxu0 0.0
        %1078 = vmatprep.subr.mxu0 0.0
        %1079 = vmatpush1.msra.mxu0 0.0
        %1080 = vmatprep.subr.mxu0 0.0
        %1081 = vmatpush1.msra.mxu0 0.0
        %1082 = vmatprep.subr.mxu0 0.0
        %1083 = vmatpush1.msra.mxu0 0.0
        %1084 = vmatprep.subr.mxu0 0.0
        %1085 = vmatpush1.msra.mxu0 0.0
        %1086 = vmatprep.subr.mxu0 0.0
        %1087 = vmatpush1.msra.mxu0 0.0
        %1088 = vmatprep.subr.mxu0 0.0
        %1089 = vmatpush1.msra.mxu0 0.0
        %1090 = vmatprep.subr.mxu0 0.0
        %1091 = vmatpush1.msra.mxu0 0.0
        %1092 = vmatprep.subr.mxu0 0.0
        %1093 = vmatpush1.msra.mxu0 0.0
        %1094 = vmatprep.subr.mxu0 0.0
        %1095 = vmatpush1.msra.mxu0 0.0
        %1096 = vmatprep.subr.mxu0 0.0
        %1097 = vmatpush1.msra.mxu0 0.0
        %1098 = vmatprep.subr.mxu0 0.0
        %1099 = vmatpush1.msra.mxu0 0.0
        %1100 = vmatprep.subr.mxu0 0.0
        %1101 = vmatpush1.msra.mxu0 0.0
        %1102 = vmatprep.subr.mxu0 0.0
        %1103 = vmatpush1.msra.mxu0 0.0
        %1104 = vmatprep.subr.mxu0 0.0
        %1105 = vmatpush1.msra.mxu0 0.0
        %1106 = vmatprep.subr.mxu0 0.0
        %1107 = vmatpush1.msra.mxu0 0.0
        %1108 = vmatprep.subr.mxu0 0.0
        %1109 = vmatpush1.msra.mxu0 0.0
        %1110 = vmatprep.mubr.f32.mxu0 0.0
        %1111 = vmatmul.mubr.f32.gmra.mrb[0].mxu0 %v1044
        %v1112 = vpop.f32.mrb[0].mxu0
        %v1113 = vadd.f32 0.0, %v1112
        %v1114 = vpop.f32.mrb[0].mxu0
        %1115 = vdwg.mxu0
        %v1116 = vld [vmem:[%s13] sm:$0x7]
        %v1117 = vld [vmem:[%s14] sm:$0x7]
        %v1118 = vld [vmem:[#allocation23] sm:$0x3]
        %v1119 = vld [vmem:[%s673] sm:$0x3]
        %v1120 = vld [vmem:[#allocation13] sm:$0xff]
        %v1121 = vld [vmem:[#allocation13 + $0x8] sm:$0xff]
        %v1122 = vld [vmem:[#allocation13 + $0x10] sm:$0xff]
        %v1123 = vld [vmem:[#allocation13 + $0x18] sm:$0xff]
        %v1124 = vld [vmem:[#allocation13 + $0x20] sm:$0xff]
        %v1125 = vld [vmem:[#allocation13 + $0x28] sm:$0xff]
        %v1126 = vld [vmem:[#allocation13 + $0x30] sm:$0xff]
        %v1127 = vld [vmem:[#allocation13 + $0x38] sm:$0xff]
        %v1130 = vrot.slane %v1113, 7
        %v1131 = vsel %vm930, %v1130, %v1041
        %vm1132 = vcmask 523264
        %v1133 = vsel %vm1132, %v1131, 0
        %1135 = vmatprep.subr.mxu0 0.0
        %1136 = vmatpush1.msra.mxu0 %v1120
        %1137 = vmatprep.subr.mxu0 0.0
        %1138 = vmatpush1.msra.mxu0 %v1121
        %1139 = vmatprep.subr.mxu0 0.0
        %1140 = vmatpush1.msra.mxu0 %v1122
        %1141 = vmatprep.subr.mxu0 0.0
        %1142 = vmatpush1.msra.mxu0 %v1123
        %1143 = vmatprep.subr.mxu0 0.0
        %1144 = vmatpush1.msra.mxu0 %v1124
        %1145 = vmatprep.subr.mxu0 0.0
        %1146 = vmatpush1.msra.mxu0 %v1125
        %1147 = vmatprep.subr.mxu0 0.0
        %1148 = vmatpush1.msra.mxu0 %v1126
        %1149 = vmatprep.subr.mxu0 0.0
        %1150 = vmatpush1.msra.mxu0 %v1127
        %1151 = vmatprep.subr.mxu0 0.0
        %1152 = vmatpush1.msra.mxu0 0.0
        %1153 = vmatprep.subr.mxu0 0.0
        %1154 = vmatpush1.msra.mxu0 0.0
        %1155 = vmatprep.subr.mxu0 0.0
        %1156 = vmatpush1.msra.mxu0 0.0
        %1157 = vmatprep.subr.mxu0 0.0
        %1158 = vmatpush1.msra.mxu0 0.0
        %1159 = vmatprep.subr.mxu0 0.0
        %1160 = vmatpush1.msra.mxu0 0.0
        %1161 = vmatprep.subr.mxu0 0.0
        %1162 = vmatpush1.msra.mxu0 0.0
        %1163 = vmatprep.subr.mxu0 0.0
        %1164 = vmatpush1.msra.mxu0 0.0
        %1165 = vmatprep.subr.mxu0 0.0
        %1166 = vmatpush1.msra.mxu0 0.0
        %1167 = vmatprep.subr.mxu0 0.0
        %1168 = vmatpush1.msra.mxu0 0.0
        %1169 = vmatprep.subr.mxu0 0.0
        %1170 = vmatpush1.msra.mxu0 0.0
        %1171 = vmatprep.subr.mxu0 0.0
        %1172 = vmatpush1.msra.mxu0 0.0
        %1173 = vmatprep.subr.mxu0 0.0
        %1174 = vmatpush1.msra.mxu0 0.0
        %1175 = vmatprep.subr.mxu0 0.0
        %1176 = vmatpush1.msra.mxu0 0.0
        %1177 = vmatprep.subr.mxu0 0.0
        %1178 = vmatpush1.msra.mxu0 0.0
        %1179 = vmatprep.subr.mxu0 0.0
        %1180 = vmatpush1.msra.mxu0 0.0
        %1181 = vmatprep.subr.mxu0 0.0
        %1182 = vmatpush1.msra.mxu0 0.0
        %1183 = vmatprep.subr.mxu0 0.0
        %1184 = vmatpush1.msra.mxu0 0.0
        %1185 = vmatprep.subr.mxu0 0.0
        %1186 = vmatpush1.msra.mxu0 0.0
        %1187 = vmatprep.subr.mxu0 0.0
        %1188 = vmatpush1.msra.mxu0 0.0
        %1189 = vmatprep.subr.mxu0 0.0
        %1190 = vmatpush1.msra.mxu0 0.0
        %1191 = vmatprep.subr.mxu0 0.0
        %1192 = vmatpush1.msra.mxu0 0.0
        %1193 = vmatprep.subr.mxu0 0.0
        %1194 = vmatpush1.msra.mxu0 0.0
        %1195 = vmatprep.subr.mxu0 0.0
        %1196 = vmatpush1.msra.mxu0 0.0
        %1197 = vmatprep.subr.mxu0 0.0
        %1198 = vmatpush1.msra.mxu0 0.0
        %1199 = vmatprep.mubr.f32.mxu0 0.0
        %1200 = vmatmul.mubr.f32.gmra.mrb[0].mxu0 %v1133
        %v1201 = vpop.f32.mrb[0].mxu0
        %v1202 = vadd.f32 0.0, %v1201
        %v1203 = vpop.f32.mrb[0].mxu0
        %1204 = vdwg.mxu0
        %v1205 = vadd.f32 %v1119, %v1202
        %v1206 = vld [vmem:[#allocation16] sm:$0xff]
        %v1207 = vld [vmem:[#allocation16 + $0x8] sm:$0xff]
        %v1208 = vld [vmem:[#allocation16 + $0x10] sm:$0xff]
        %v1209 = vld [vmem:[#allocation16 + $0x18] sm:$0xff]
        %v1210 = vlaneseq
        %v1211 = vshrl.u32 %v1210, 7
        %v1212 = vsub.s32 0, %v1211
        %v1213 = vrot.slane %v1117, %v1212
        %v1215 = vsel %vm788, %v1118, 0
        %1217 = vmatprep.subr.mxu0 0.0
        %1218 = vmatpush1.msra.mxu0 %v1206
        %1219 = vmatprep.subr.mxu0 0.0
        %1220 = vmatpush1.msra.mxu0 %v1207
        %1221 = vmatprep.subr.mxu0 0.0
        %1222 = vmatpush1.msra.mxu0 %v1208
        %1223 = vmatprep.subr.mxu0 0.0
        %1224 = vmatpush1.msra.mxu0 %v1209
        %1225 = vmatprep.subr.mxu0 0.0
        %1226 = vmatpush1.msra.mxu0 0.0
        %1227 = vmatprep.subr.mxu0 0.0
        %1228 = vmatpush1.msra.mxu0 0.0
        %1229 = vmatprep.subr.mxu0 0.0
        %1230 = vmatpush1.msra.mxu0 0.0
        %1231 = vmatprep.subr.mxu0 0.0
        %1232 = vmatpush1.msra.mxu0 0.0
        %1233 = vmatprep.subr.mxu0 0.0
        %1234 = vmatpush1.msra.mxu0 0.0
        %1235 = vmatprep.subr.mxu0 0.0
        %1236 = vmatpush1.msra.mxu0 0.0
        %1237 = vmatprep.subr.mxu0 0.0
        %1238 = vmatpush1.msra.mxu0 0.0
        %1239 = vmatprep.subr.mxu0 0.0
        %1240 = vmatpush1.msra.mxu0 0.0
        %1241 = vmatprep.subr.mxu0 0.0
        %1242 = vmatpush1.msra.mxu0 0.0
        %1243 = vmatprep.subr.mxu0 0.0
        %1244 = vmatpush1.msra.mxu0 0.0
        %1245 = vmatprep.subr.mxu0 0.0
        %1246 = vmatpush1.msra.mxu0 0.0
        %1247 = vmatprep.subr.mxu0 0.0
        %1248 = vmatpush1.msra.mxu0 0.0
        %1249 = vmatprep.subr.mxu0 0.0
        %1250 = vmatpush1.msra.mxu0 0.0
        %1251 = vmatprep.subr.mxu0 0.0
        %1252 = vmatpush1.msra.mxu0 0.0
        %1253 = vmatprep.subr.mxu0 0.0
        %1254 = vmatpush1.msra.mxu0 0.0
        %1255 = vmatprep.subr.mxu0 0.0
        %1256 = vmatpush1.msra.mxu0 0.0
        %1257 = vmatprep.subr.mxu0 0.0
        %1258 = vmatpush1.msra.mxu0 0.0
        %1259 = vmatprep.subr.mxu0 0.0
        %1260 = vmatpush1.msra.mxu0 0.0
        %1261 = vmatprep.subr.mxu0 0.0
        %1262 = vmatpush1.msra.mxu0 0.0
        %1263 = vmatprep.subr.mxu0 0.0
        %1264 = vmatpush1.msra.mxu0 0.0
        %1265 = vmatprep.subr.mxu0 0.0
        %1266 = vmatpush1.msra.mxu0 0.0
        %1267 = vmatprep.subr.mxu0 0.0
        %1268 = vmatpush1.msra.mxu0 0.0
        %1269 = vmatprep.subr.mxu0 0.0
        %1270 = vmatpush1.msra.mxu0 0.0
        %1271 = vmatprep.subr.mxu0 0.0
        %1272 = vmatpush1.msra.mxu0 0.0
        %1273 = vmatprep.subr.mxu0 0.0
        %1274 = vmatpush1.msra.mxu0 0.0
        %1275 = vmatprep.subr.mxu0 0.0
        %1276 = vmatpush1.msra.mxu0 0.0
        %1277 = vmatprep.subr.mxu0 0.0
        %1278 = vmatpush1.msra.mxu0 0.0
        %1279 = vmatprep.subr.mxu0 0.0
        %1280 = vmatpush1.msra.mxu0 0.0
        %1281 = vmatprep.mubr.f32.mxu0 0.0
        %1282 = vmatmul.mubr.f32.gmra.mrb[0].mxu0 %v1215
        %v1283 = vpop.f32.mrb[0].mxu0
        %v1284 = vadd.f32 %v1213, %v1283
        %v1285 = vpop.f32.mrb[0].mxu0
        %1286 = vdwg.mxu0
        %v1287 = vadd.f32 %v1205, %v1284
        %v1288 = vxor.u32 %v1287, 2147483648
        %v1289 = vmul.f32 %v1288, 1.442695
        %v1290 = vpow.pop %v1289
        %v1291 = vadd.f32 %v1290, 1.0
        %v1292 = vrcp.pop %v1291
        %v1293 = vmul.f32 1.0, %v1292
        %1295 = vrot.lane.b32.xlu0 %v1284, 64
        %v1296 = vpop.permute.xlu0 %1295
        %v1298 = vmul.f32 %v1293, %v1296
        %1300 = vrot.lane.b32.xlu0 %v1298, 64
        %v1301 = vpop.permute.xlu0 %1300
        %v1303 = vadd.f32 %v1205, %v1301
        %v1304 = vtanh.pop %v1303
        %v1305 = vsub.f32 1.0, %v1293
        %1307 = vrot.lane.b32.xlu0 %v1304, 96
        %v1308 = vpop.permute.xlu0 %1307
        %v1310 = vmul.f32 %v1305, %v1308
        %1311 = vrot.lane.b32.xlu0 %v1118, 32
        %v1312 = vpop.permute.xlu0 %1311
        %v1314 = vmul.f32 %v1293, %v1312
        %v1315 = vadd.f32 %v1310, %v1314
        %1317 = vrot.lane.b32.xlu0 %v1315, 96
        %v1318 = vpop.permute.xlu0 %1317
        %vm1320 = vcmask 254976
        %1321 = vst.msk [vmem:[#allocation23] sm:$0x3] %vm1320, %v1318
        %s1322 = scalar_lea.vmem [#allocation23], 2
        %v1323 = vld [vmem:[%s1322] sm:$0x3]
        %v1324 = vld [vmem:[#allocation14] sm:$0xff]
        %v1325 = vld [vmem:[#allocation14 + $0x8] sm:$0xff]
        %v1326 = vld [vmem:[#allocation14 + $0x10] sm:$0xff]
        %v1327 = vld [vmem:[#allocation14 + $0x18] sm:$0xff]
        %v1328 = vlaneseq
        %v1329 = vshrl.u32 %v1328, 7
        %v1330 = vsub.s32 1, %v1329
        %v1331 = vrot.slane %v1116, %v1330
        %v1332 = vsel %vm788, %v1318, 0
        %1334 = vmatprep.subr.mxu0 0.0
        %1335 = vmatpush1.msra.mxu0 %v1324
        %1336 = vmatprep.subr.mxu0 0.0
        %1337 = vmatpush1.msra.mxu0 %v1325
        %1338 = vmatprep.subr.mxu0 0.0
        %1339 = vmatpush1.msra.mxu0 %v1326
        %1340 = vmatprep.subr.mxu0 0.0
        %1341 = vmatpush1.msra.mxu0 %v1327
        %1342 = vmatprep.subr.mxu0 0.0
        %1343 = vmatpush1.msra.mxu0 0.0
        %1344 = vmatprep.subr.mxu0 0.0
        %1345 = vmatpush1.msra.mxu0 0.0
        %1346 = vmatprep.subr.mxu0 0.0
        %1347 = vmatpush1.msra.mxu0 0.0
        %1348 = vmatprep.subr.mxu0 0.0
        %1349 = vmatpush1.msra.mxu0 0.0
        %1350 = vmatprep.subr.mxu0 0.0
        %1351 = vmatpush1.msra.mxu0 0.0
        %1352 = vmatprep.subr.mxu0 0.0
        %1353 = vmatpush1.msra.mxu0 0.0
        %1354 = vmatprep.subr.mxu0 0.0
        %1355 = vmatpush1.msra.mxu0 0.0
        %1356 = vmatprep.subr.mxu0 0.0
        %1357 = vmatpush1.msra.mxu0 0.0
        %1358 = vmatprep.subr.mxu0 0.0
        %1359 = vmatpush1.msra.mxu0 0.0
        %1360 = vmatprep.subr.mxu0 0.0
        %1361 = vmatpush1.msra.mxu0 0.0
        %1362 = vmatprep.subr.mxu0 0.0
        %1363 = vmatpush1.msra.mxu0 0.0
        %1364 = vmatprep.subr.mxu0 0.0
        %1365 = vmatpush1.msra.mxu0 0.0
        %1366 = vmatprep.subr.mxu0 0.0
        %1367 = vmatpush1.msra.mxu0 0.0
        %1368 = vmatprep.subr.mxu0 0.0
        %1369 = vmatpush1.msra.mxu0 0.0
        %1370 = vmatprep.subr.mxu0 0.0
        %1371 = vmatpush1.msra.mxu0 0.0
        %1372 = vmatprep.subr.mxu0 0.0
        %1373 = vmatpush1.msra.mxu0 0.0
        %1374 = vmatprep.subr.mxu0 0.0
        %1375 = vmatpush1.msra.mxu0 0.0
        %1376 = vmatprep.subr.mxu0 0.0
        %1377 = vmatpush1.msra.mxu0 0.0
        %1378 = vmatprep.subr.mxu0 0.0
        %1379 = vmatpush1.msra.mxu0 0.0
        %1380 = vmatprep.subr.mxu0 0.0
        %1381 = vmatpush1.msra.mxu0 0.0
        %1382 = vmatprep.subr.mxu0 0.0
        %1383 = vmatpush1.msra.mxu0 0.0
        %1384 = vmatprep.subr.mxu0 0.0
        %1385 = vmatpush1.msra.mxu0 0.0
        %1386 = vmatprep.subr.mxu0 0.0
        %1387 = vmatpush1.msra.mxu0 0.0
        %1388 = vmatprep.subr.mxu0 0.0
        %1389 = vmatpush1.msra.mxu0 0.0
        %1390 = vmatprep.subr.mxu0 0.0
        %1391 = vmatpush1.msra.mxu0 0.0
        %1392 = vmatprep.subr.mxu0 0.0
        %1393 = vmatpush1.msra.mxu0 0.0
        %1394 = vmatprep.subr.mxu0 0.0
        %1395 = vmatpush1.msra.mxu0 0.0
        %1396 = vmatprep.subr.mxu0 0.0
        %1397 = vmatpush1.msra.mxu0 0.0
        %1398 = vmatprep.mubr.f32.mxu0 0.0
        %1399 = vmatmul.mubr.f32.gmra.mrb[0].mxu0 %v1332
        %v1400 = vpop.f32.mrb[0].mxu0
        %v1401 = vadd.f32 %v1331, %v1400
        %v1402 = vpop.f32.mrb[0].mxu0
        %1403 = vdwg.mxu0
        %v1404 = vld [vmem:[#allocation17] sm:$0xff]
        %v1405 = vld [vmem:[#allocation17 + $0x8] sm:$0xff]
        %v1406 = vld [vmem:[#allocation17 + $0x10] sm:$0xff]
        %v1407 = vld [vmem:[#allocation17 + $0x18] sm:$0xff]
        %v1408 = vlaneseq
        %v1409 = vshrl.u32 %v1408, 7
        %v1410 = vsub.s32 1, %v1409
        %v1411 = vrot.slane %v1117, %v1410
        %v1413 = vsel %vm788, %v1323, 0
        %1415 = vmatprep.subr.mxu0 0.0
        %1416 = vmatpush1.msra.mxu0 %v1404
        %1417 = vmatprep.subr.mxu0 0.0
        %1418 = vmatpush1.msra.mxu0 %v1405
        %1419 = vmatprep.subr.mxu0 0.0
        %1420 = vmatpush1.msra.mxu0 %v1406
        %1421 = vmatprep.subr.mxu0 0.0
        %1422 = vmatpush1.msra.mxu0 %v1407
        %1423 = vmatprep.subr.mxu0 0.0
        %1424 = vmatpush1.msra.mxu0 0.0
        %1425 = vmatprep.subr.mxu0 0.0
        %1426 = vmatpush1.msra.mxu0 0.0
        %1427 = vmatprep.subr.mxu0 0.0
        %1428 = vmatpush1.msra.mxu0 0.0
        %1429 = vmatprep.subr.mxu0 0.0
        %1430 = vmatpush1.msra.mxu0 0.0
        %1431 = vmatprep.subr.mxu0 0.0
        %1432 = vmatpush1.msra.mxu0 0.0
        %1433 = vmatprep.subr.mxu0 0.0
        %1434 = vmatpush1.msra.mxu0 0.0
        %1435 = vmatprep.subr.mxu0 0.0
        %1436 = vmatpush1.msra.mxu0 0.0
        %1437 = vmatprep.subr.mxu0 0.0
        %1438 = vmatpush1.msra.mxu0 0.0
        %1439 = vmatprep.subr.mxu0 0.0
        %1440 = vmatpush1.msra.mxu0 0.0
        %1441 = vmatprep.subr.mxu0 0.0
        %1442 = vmatpush1.msra.mxu0 0.0
        %1443 = vmatprep.subr.mxu0 0.0
        %1444 = vmatpush1.msra.mxu0 0.0
        %1445 = vmatprep.subr.mxu0 0.0
        %1446 = vmatpush1.msra.mxu0 0.0
        %1447 = vmatprep.subr.mxu0 0.0
        %1448 = vmatpush1.msra.mxu0 0.0
        %1449 = vmatprep.subr.mxu0 0.0
        %1450 = vmatpush1.msra.mxu0 0.0
        %1451 = vmatprep.subr.mxu0 0.0
        %1452 = vmatpush1.msra.mxu0 0.0
        %1453 = vmatprep.subr.mxu0 0.0
        %1454 = vmatpush1.msra.mxu0 0.0
        %1455 = vmatprep.subr.mxu0 0.0
        %1456 = vmatpush1.msra.mxu0 0.0
        %1457 = vmatprep.subr.mxu0 0.0
        %1458 = vmatpush1.msra.mxu0 0.0
        %1459 = vmatprep.subr.mxu0 0.0
        %1460 = vmatpush1.msra.mxu0 0.0
        %1461 = vmatprep.subr.mxu0 0.0
        %1462 = vmatpush1.msra.mxu0 0.0
        %1463 = vmatprep.subr.mxu0 0.0
        %1464 = vmatpush1.msra.mxu0 0.0
        %1465 = vmatprep.subr.mxu0 0.0
        %1466 = vmatpush1.msra.mxu0 0.0
        %1467 = vmatprep.subr.mxu0 0.0
        %1468 = vmatpush1.msra.mxu0 0.0
        %1469 = vmatprep.subr.mxu0 0.0
        %1470 = vmatpush1.msra.mxu0 0.0
        %1471 = vmatprep.subr.mxu0 0.0
        %1472 = vmatpush1.msra.mxu0 0.0
        %1473 = vmatprep.subr.mxu0 0.0
        %1474 = vmatpush1.msra.mxu0 0.0
        %1475 = vmatprep.subr.mxu0 0.0
        %1476 = vmatpush1.msra.mxu0 0.0
        %1477 = vmatprep.subr.mxu0 0.0
        %1478 = vmatpush1.msra.mxu0 0.0
        %1479 = vmatprep.mubr.f32.mxu0 0.0
        %1480 = vmatmul.mubr.f32.gmra.mrb[0].mxu0 %v1413
        %v1481 = vpop.f32.mrb[0].mxu0
        %v1482 = vadd.f32 %v1411, %v1481
        %v1483 = vpop.f32.mrb[0].mxu0
        %1484 = vdwg.mxu0
        %v1485 = vadd.f32 %v1401, %v1482
        %v1486 = vxor.u32 %v1485, 2147483648
        %v1487 = vmul.f32 %v1486, 1.442695
        %v1488 = vpow.pop %v1487
        %v1489 = vadd.f32 %v1488, 1.0
        %v1490 = vrcp.pop %v1489
        %v1491 = vmul.f32 1.0, %v1490
        %1493 = vrot.lane.b32.xlu0 %v1482, 64
        %v1494 = vpop.permute.xlu0 %1493
        %v1496 = vmul.f32 %v1491, %v1494
        %1498 = vrot.lane.b32.xlu0 %v1496, 64
        %v1499 = vpop.permute.xlu0 %1498
        %v1501 = vadd.f32 %v1401, %v1499
        %v1502 = vtanh.pop %v1501
        %v1503 = vsub.f32 1.0, %v1491
        %1505 = vrot.lane.b32.xlu0 %v1502, 96
        %v1506 = vpop.permute.xlu0 %1505
        %v1508 = vmul.f32 %v1503, %v1506
        %1509 = vrot.lane.b32.xlu0 %v1323, 32
        %v1510 = vpop.permute.xlu0 %1509
        %v1512 = vmul.f32 %v1491, %v1510
        %v1513 = vadd.f32 %v1508, %v1512
        %1515 = vrot.lane.b32.xlu0 %v1513, 96
        %v1516 = vpop.permute.xlu0 %1515
        %1518 = vst.msk [vmem:[%s1322] sm:$0x3] %vm1320, %v1516
        %v1519 = vld [vmem:[%s782] sm:$0x3]
        %v1520 = vld [vmem:[%s9] sm:$0xff]
        %v1521 = vld [vmem:[%s9 + $0x8] sm:$0xff]
        %v1522 = vld [vmem:[%s9 + $0x10] sm:$0xff]
        %v1523 = vld [vmem:[%s9 + $0x18] sm:$0xff]
        %v1524 = vlaneseq
        %v1525 = vshrl.u32 %v1524, 7
        %v1526 = vsub.s32 2, %v1525
        %v1527 = vrot.slane %v1116, %v1526
        %v1528 = vsel %vm788, %v1516, 0
        %1530 = vmatprep.subr.mxu0 0.0
        %1531 = vmatpush1.msra.mxu0 %v1520
        %1532 = vmatprep.subr.mxu0 0.0
        %1533 = vmatpush1.msra.mxu0 %v1521
        %1534 = vmatprep.subr.mxu0 0.0
        %1535 = vmatpush1.msra.mxu0 %v1522
        %1536 = vmatprep.subr.mxu0 0.0
        %1537 = vmatpush1.msra.mxu0 %v1523
        %1538 = vmatprep.subr.mxu0 0.0
        %1539 = vmatpush1.msra.mxu0 0.0
        %1540 = vmatprep.subr.mxu0 0.0
        %1541 = vmatpush1.msra.mxu0 0.0
        %1542 = vmatprep.subr.mxu0 0.0
        %1543 = vmatpush1.msra.mxu0 0.0
        %1544 = vmatprep.subr.mxu0 0.0
        %1545 = vmatpush1.msra.mxu0 0.0
        %1546 = vmatprep.subr.mxu0 0.0
        %1547 = vmatpush1.msra.mxu0 0.0
        %1548 = vmatprep.subr.mxu0 0.0
        %1549 = vmatpush1.msra.mxu0 0.0
        %1550 = vmatprep.subr.mxu0 0.0
        %1551 = vmatpush1.msra.mxu0 0.0
        %1552 = vmatprep.subr.mxu0 0.0
        %1553 = vmatpush1.msra.mxu0 0.0
        %1554 = vmatprep.subr.mxu0 0.0
        %1555 = vmatpush1.msra.mxu0 0.0
        %1556 = vmatprep.subr.mxu0 0.0
        %1557 = vmatpush1.msra.mxu0 0.0
        %1558 = vmatprep.subr.mxu0 0.0
        %1559 = vmatpush1.msra.mxu0 0.0
        %1560 = vmatprep.subr.mxu0 0.0
        %1561 = vmatpush1.msra.mxu0 0.0
        %1562 = vmatprep.subr.mxu0 0.0
        %1563 = vmatpush1.msra.mxu0 0.0
        %1564 = vmatprep.subr.mxu0 0.0
        %1565 = vmatpush1.msra.mxu0 0.0
        %1566 = vmatprep.subr.mxu0 0.0
        %1567 = vmatpush1.msra.mxu0 0.0
        %1568 = vmatprep.subr.mxu0 0.0
        %1569 = vmatpush1.msra.mxu0 0.0
        %1570 = vmatprep.subr.mxu0 0.0
        %1571 = vmatpush1.msra.mxu0 0.0
        %1572 = vmatprep.subr.mxu0 0.0
        %1573 = vmatpush1.msra.mxu0 0.0
        %1574 = vmatprep.subr.mxu0 0.0
        %1575 = vmatpush1.msra.mxu0 0.0
        %1576 = vmatprep.subr.mxu0 0.0
        %1577 = vmatpush1.msra.mxu0 0.0
        %1578 = vmatprep.subr.mxu0 0.0
        %1579 = vmatpush1.msra.mxu0 0.0
        %1580 = vmatprep.subr.mxu0 0.0
        %1581 = vmatpush1.msra.mxu0 0.0
        %1582 = vmatprep.subr.mxu0 0.0
        %1583 = vmatpush1.msra.mxu0 0.0
        %1584 = vmatprep.subr.mxu0 0.0
        %1585 = vmatpush1.msra.mxu0 0.0
        %1586 = vmatprep.subr.mxu0 0.0
        %1587 = vmatpush1.msra.mxu0 0.0
        %1588 = vmatprep.subr.mxu0 0.0
        %1589 = vmatpush1.msra.mxu0 0.0
        %1590 = vmatprep.subr.mxu0 0.0
        %1591 = vmatpush1.msra.mxu0 0.0
        %1592 = vmatprep.subr.mxu0 0.0
        %1593 = vmatpush1.msra.mxu0 0.0
        %1594 = vmatprep.mubr.f32.mxu0 0.0
        %1595 = vmatmul.mubr.f32.gmra.mrb[0].mxu0 %v1528
        %v1596 = vpop.f32.mrb[0].mxu0
        %v1597 = vadd.f32 %v1527, %v1596
        %v1598 = vpop.f32.mrb[0].mxu0
        %1599 = vdwg.mxu0
        %v1600 = vld [vmem:[#allocation19] sm:$0xff]
        %v1601 = vld [vmem:[#allocation19 + $0x8] sm:$0xff]
        %v1602 = vld [vmem:[#allocation19 + $0x10] sm:$0xff]
        %v1603 = vld [vmem:[#allocation19 + $0x18] sm:$0xff]
        %v1604 = vlaneseq
        %v1605 = vshrl.u32 %v1604, 7
        %v1606 = vsub.s32 2, %v1605
        %v1607 = vrot.slane %v1117, %v1606
        %v1609 = vsel %vm788, %v1519, 0
        %1611 = vmatprep.subr.mxu0 0.0
        %1612 = vmatpush1.msra.mxu0 %v1600
        %1613 = vmatprep.subr.mxu0 0.0
        %1614 = vmatpush1.msra.mxu0 %v1601
        %1615 = vmatprep.subr.mxu0 0.0
        %1616 = vmatpush1.msra.mxu0 %v1602
        %1617 = vmatprep.subr.mxu0 0.0
        %1618 = vmatpush1.msra.mxu0 %v1603
        %1619 = vmatprep.subr.mxu0 0.0
        %1620 = vmatpush1.msra.mxu0 0.0
        %1621 = vmatprep.subr.mxu0 0.0
        %1622 = vmatpush1.msra.mxu0 0.0
        %1623 = vmatprep.subr.mxu0 0.0
        %1624 = vmatpush1.msra.mxu0 0.0
        %1625 = vmatprep.subr.mxu0 0.0
        %1626 = vmatpush1.msra.mxu0 0.0
        %1627 = vmatprep.subr.mxu0 0.0
        %1628 = vmatpush1.msra.mxu0 0.0
        %1629 = vmatprep.subr.mxu0 0.0
        %1630 = vmatpush1.msra.mxu0 0.0
        %1631 = vmatprep.subr.mxu0 0.0
        %1632 = vmatpush1.msra.mxu0 0.0
        %1633 = vmatprep.subr.mxu0 0.0
        %1634 = vmatpush1.msra.mxu0 0.0
        %1635 = vmatprep.subr.mxu0 0.0
        %1636 = vmatpush1.msra.mxu0 0.0
        %1637 = vmatprep.subr.mxu0 0.0
        %1638 = vmatpush1.msra.mxu0 0.0
        %1639 = vmatprep.subr.mxu0 0.0
        %1640 = vmatpush1.msra.mxu0 0.0
        %1641 = vmatprep.subr.mxu0 0.0
        %1642 = vmatpush1.msra.mxu0 0.0
        %1643 = vmatprep.subr.mxu0 0.0
        %1644 = vmatpush1.msra.mxu0 0.0
        %1645 = vmatprep.subr.mxu0 0.0
        %1646 = vmatpush1.msra.mxu0 0.0
        %1647 = vmatprep.subr.mxu0 0.0
        %1648 = vmatpush1.msra.mxu0 0.0
        %1649 = vmatprep.subr.mxu0 0.0
        %1650 = vmatpush1.msra.mxu0 0.0
        %1651 = vmatprep.subr.mxu0 0.0
        %1652 = vmatpush1.msra.mxu0 0.0
        %1653 = vmatprep.subr.mxu0 0.0
        %1654 = vmatpush1.msra.mxu0 0.0
        %1655 = vmatprep.subr.mxu0 0.0
        %1656 = vmatpush1.msra.mxu0 0.0
        %1657 = vmatprep.subr.mxu0 0.0
        %1658 = vmatpush1.msra.mxu0 0.0
        %1659 = vmatprep.subr.mxu0 0.0
        %1660 = vmatpush1.msra.mxu0 0.0
        %1661 = vmatprep.subr.mxu0 0.0
        %1662 = vmatpush1.msra.mxu0 0.0
        %1663 = vmatprep.subr.mxu0 0.0
        %1664 = vmatpush1.msra.mxu0 0.0
        %1665 = vmatprep.subr.mxu0 0.0
        %1666 = vmatpush1.msra.mxu0 0.0
        %1667 = vmatprep.subr.mxu0 0.0
        %1668 = vmatpush1.msra.mxu0 0.0
        %1669 = vmatprep.subr.mxu0 0.0
        %1670 = vmatpush1.msra.mxu0 0.0
        %1671 = vmatprep.subr.mxu0 0.0
        %1672 = vmatpush1.msra.mxu0 0.0
        %1673 = vmatprep.subr.mxu0 0.0
        %1674 = vmatpush1.msra.mxu0 0.0
        %1675 = vmatprep.mubr.f32.mxu0 0.0
        %1676 = vmatmul.mubr.f32.gmra.mrb[0].mxu0 %v1609
        %v1677 = vpop.f32.mrb[0].mxu0
        %v1678 = vadd.f32 %v1607, %v1677
        %v1679 = vpop.f32.mrb[0].mxu0
        %1680 = vdwg.mxu0
        %v1681 = vadd.f32 %v1597, %v1678
        %v1682 = vxor.u32 %v1681, 2147483648
        %v1683 = vmul.f32 %v1682, 1.442695
        %v1684 = vpow.pop %v1683
        %v1685 = vadd.f32 %v1684, 1.0
        %v1686 = vrcp.pop %v1685
        %v1687 = vmul.f32 1.0, %v1686
        %1689 = vrot.lane.b32.xlu0 %v1678, 64
        %v1690 = vpop.permute.xlu0 %1689
        %v1692 = vmul.f32 %v1687, %v1690
        %1694 = vrot.lane.b32.xlu0 %v1692, 64
        %v1695 = vpop.permute.xlu0 %1694
        %v1697 = vadd.f32 %v1597, %v1695
        %v1698 = vtanh.pop %v1697
        %v1699 = vsub.f32 1.0, %v1687
        %1701 = vrot.lane.b32.xlu0 %v1698, 96
        %v1702 = vpop.permute.xlu0 %1701
        %v1704 = vmul.f32 %v1699, %v1702
        %1705 = vrot.lane.b32.xlu0 %v1519, 32
        %v1706 = vpop.permute.xlu0 %1705
        %v1708 = vmul.f32 %v1687, %v1706
        %v1709 = vadd.f32 %v1704, %v1708
        %1711 = vrot.lane.b32.xlu0 %v1709, 96
        %v1712 = vpop.permute.xlu0 %1711
        %1714 = vst.msk [vmem:[%s782] sm:$0x3] %vm1320, %v1712
        %1715 = vst.msk [vmem:[%s759] sm:$0x3] %vm1320, %v1712
        %vm1717 = vcmask 517120
        %1718 = vst.msk [vmem:[%s766] sm:$0x3] %vm1717, %v1131
        %s1719 = sand.u32 %s407, 1
        %s1720 = scalar_lea.sflag [#allocation4], %s1719
        %s1721 = sand.u32 %s407, 1
        %s1722 = smul.addr %s1721, 2
        %s1723 = scalar_lea.vmem [#allocation20], %s1722
        %s1724 = sand.u32 %s43, 1
        %s1725 = scalar_lea.sflag [#allocation22], %s1724
        %s1726 = sand.u32 %s435, 1
        %s1727 = smul.addr %s1726, 2
        %s1728 = scalar_lea.vmem [#allocation21], %s1727
        // Predicated region
        $region129: #{tpu_custom_call.1} parent=79 // pred_check
          %p1729 = pneg %p417
        $region130: #{tpu_custom_call.1} parent=79 // pred_check_branch
          %1731 = sbr.rel (%p1729) target = $region132
        $region131: #{tpu_custom_call.1} parent=79 // pred_region
          %s1733 = ssub.s32 32, 32
          %1734 = vsyncadd %s1720, %s1733
          %s1735 = sadd.s32 %s47, %s48
          %s1736 = smul.addr %s1735, 32
          %s1737 = scalar_lea.hbm %s15, %s1736
          %s1739 = sshll.u32 %s1723, 4
          %s1740 = int_to_ptr.vmem [resolvable:$true] %s1739
          %1742 = dma.vmem_to_hbm [thread:$0]  %s1740, 32, %s1737, %s1720
        $region132: #{tpu_custom_call.1} parent=79 // pred_fallthru
          _
        // Predicated region
        $region133: #{tpu_custom_call.1} parent=79 // pred_check
          %p1743 = pneg %p445
        $region134: #{tpu_custom_call.1} parent=79 // pred_check_branch
          %1745 = sbr.rel (%p1743) target = $region136
        $region135: #{tpu_custom_call.1} parent=79 // pred_region
          %s1747 = ssub.s32 32, 32
          %1748 = vsyncadd %s1725, %s1747
          %s1749 = sadd.s32 %s47, %s48
          %s1750 = smul.addr %s1749, 32
          %s1751 = scalar_lea.hbm %s16, %s1750
          %s1753 = sshll.u32 %s1728, 4
          %s1754 = int_to_ptr.vmem [resolvable:$true] %s1753
          %1756 = dma.vmem_to_hbm [thread:$0]  %s1754, 32, %s1751, %s1725
        $region136: #{tpu_custom_call.1} parent=79 // pred_fallthru
          _
        // Predicated region
        $region137: #{tpu_custom_call.1} parent=79 // pred_check
          %p1757 = pneg %p471
        $region138: #{tpu_custom_call.1} parent=79 // pred_check_branch
          %1759 = sbr.rel (%p1757) target = $region140
        $region139: #{tpu_custom_call.1} parent=79 // pred_region
          %s1761 = ssub.s32 96, 96
          %1762 = vsyncadd [#allocation22], %s1761
          %s1763 = smul.addr %s47, 32
          %s1764 = scalar_lea.hbm %s17, %s1763
          %s1765 = sshll.u32 [#allocation23], 4
          %s1766 = int_to_ptr.vmem [resolvable:$true] %s1765
          %1771 = dma.vmem_to_hbm [thread:$0]  %s1766, 96, %s1764, [#allocation22], 32, 32, 2
        $region140: #{tpu_custom_call.1} parent=79 // pred_fallthru
          _
        // Predicated region
        $region141: #{tpu_custom_call.1} parent=79 // pred_check
          %p1772 = pneg %p471
        $region142: #{tpu_custom_call.1} parent=79 // pred_check_branch
          %1774 = sbr.rel (%p1772) target = $region144
        $region143: #{tpu_custom_call.1} parent=79 // pred_region
          %1775 = dma.done [#allocation22], 96
        $region144: #{tpu_custom_call.1} parent=79 // pred_fallthru
          _
      $region80: #{tpu_custom_call.1} parent=5 // pred_fallthru
        _
      %p1776 = scmp.le.s32.totalorder 2, %s38
      // Predicated region
      $region145: #{tpu_custom_call.1} parent=5 // pred_check
        %p1777 = pneg %p1776
      $region146: #{tpu_custom_call.1} parent=5 // pred_check_branch
        %1779 = sbr.rel (%p1777) target = $region148
      $region147: #{tpu_custom_call.1} parent=5 // pred_region
        %s1780 = ssub.s32 %s38, 2
        // Predicated region
        $region149: #{tpu_custom_call.1} parent=147 // pred_check
          %p1781 = pneg %p423
        $region150: #{tpu_custom_call.1} parent=147 // pred_check_branch
          %1783 = sbr.rel (%p1781) target = $region152
        $region151: #{tpu_custom_call.1} parent=147 // pred_region
          %s1784 = sand.u32 %s408, 1
          %s1785 = scalar_lea.sflag [#allocation4], %s1784
          %s1786 = sand.u32 %s408, 1
          %s1787 = smul.addr %s1786, 2
          %s1788 = scalar_lea.vmem [#allocation20], %s1787
          %1789 = dma.done %s1785, 32
        $region152: #{tpu_custom_call.1} parent=147 // pred_fallthru
          _
        // Predicated region
        $region153: #{tpu_custom_call.1} parent=147 // pred_check
          %p1790 = pneg %p451
        $region154: #{tpu_custom_call.1} parent=147 // pred_check_branch
          %1792 = sbr.rel (%p1790) target = $region156
        $region155: #{tpu_custom_call.1} parent=147 // pred_region
          %s1793 = sand.u32 %s44, 1
          %s1794 = scalar_lea.sflag [#allocation22], %s1793
          %s1795 = sand.u32 %s436, 1
          %s1796 = smul.addr %s1795, 2
          %s1797 = scalar_lea.vmem [#allocation21], %s1796
          %1798 = dma.done %s1794, 32
        $region156: #{tpu_custom_call.1} parent=147 // pred_fallthru
          _
      $region148: #{tpu_custom_call.1} parent=5 // pred_fallthru
        _
    $region6: #{tpu_custom_call.1} parent=1 // loop_footer
      %s42 = sadd.s32 1, %s38
    $region7: #{tpu_custom_call.1} parent=1 // loop_footer_branch
      %37 = sbr.rel target = $region3
    $region8: #{tpu_custom_call.1} parent=1 // loop_exit
      _
    %1799 = vsyncpa [#allocation3], 1
    %s1800 = scalar_lea.sflag [#allocation3], 1
    %1801 = vsyncpa %s1800, 1
    %1802 = vsyncpa [#allocation6], 1
    %1803 = vsyncpa [#allocation9], 1
    %1804 = vsyncpa [#allocation12], 1
    %1805 = vsyncpa [#allocation15], 1
    %1806 = vsyncpa [#allocation18], 1
    %1807 = vsyncpa [#allocation4], 1
    %s1808 = scalar_lea.sflag [#allocation4], 1
    %1809 = vsyncpa %s1808, 1
    %1810 = vsyncpa [#allocation22], 1
    %s1811 = scalar_lea.sflag [#allocation22], 1
    %1812 = vsyncpa %s1811, 1

</llo_original>
